<compile_context>
chip_gen: v6e
topology: v6e:2x2x1
jax: 0.10.0
libtpu: 0.0.40
codegen_flags: <defaults>
</compile_context>

<pallas_src>
import functools

import jax
import jax.numpy as jnp
from jax import lax
from jax.experimental import pallas as pl
from jax.experimental.pallas import tpu as pltpu

LN_EPS = 1e-5


def _round_up(v, m):
    return (v + m - 1) // m * m


def _ffn_kernel(x_ref, gamma_ref, beta_ref, w1_ref, b1_ref, w2_ref, b2_ref,
                o_ref, acc_ref, xn_ref, *, e_true, e_pad, act_dtype):
    """Grid = (row_tiles, hidden_tiles); hidden axis is the reduction axis.

    x_ref:     (tm, E_pad)  full-row tile (invariant across the hidden axis)
    w1_ref:    (E_pad, th)  slice of fc1 weights
    w2_ref:    (th, E_pad)  slice of fc2 weights
    acc_ref:   (tm, E_pad)  f32 fc2 accumulator (scratch)
    xn_ref:    (tm, E_pad)  cached LayerNorm output in the MXU dtype (scratch)
    """
    hstep = pl.program_id(1)

    @pl.when(hstep == 0)
    def _():
        # --- prenorm LayerNorm over the *true* embed dim (biased var, torch).
        # Padded columns of x are zero and gamma/beta are zero-padded, so the
        # padded columns of xn come out exactly zero (required for fc1).
        xv = x_ref[...].astype(jnp.float32)
        mean = jnp.sum(xv, axis=-1, keepdims=True) * (1.0 / e_true)
        xc = xv - mean
        sq = jnp.sum(xc * xc, axis=-1, keepdims=True)
        if e_pad > e_true:
            # remove the (0 - mean)^2 contribution of the zero-padded columns
            sq = sq - (e_pad - e_true) * (mean * mean)
        var = sq * (1.0 / e_true)
        inv = lax.rsqrt(var + LN_EPS)
        xn = (xc * inv) * gamma_ref[...] + beta_ref[...]
        xn_ref[...] = xn.astype(xn_ref.dtype)
        acc_ref[...] = jnp.zeros_like(acc_ref)

    # --- fc1 slice + SiLU (MXU operands in matmul dtype, f32 accumulation) ---
    h = jnp.dot(xn_ref[...], w1_ref[...], preferred_element_type=jnp.float32)
    h = (h + b1_ref[...]).astype(act_dtype)
    h = h * jax.nn.sigmoid(h)            # silu
    # hidden_dropout: identity (p=0.0 / eval mode)

    # --- fc2 partial: accumulate into the f32 scratch ---
    acc_ref[...] += jnp.dot(h.astype(w2_ref.dtype), w2_ref[...],
                            preferred_element_type=jnp.float32)

    @pl.when(hstep == pl.num_programs(1) - 1)
    def _():
        # dropout: identity (p=0.0 / eval mode); add bias + residual, store.
        y = acc_ref[...] + b2_ref[...]
        o_ref[...] = (y + x_ref[...].astype(jnp.float32)).astype(o_ref.dtype)


@functools.partial(
    jax.jit,
    static_argnames=("tm", "th", "matmul_dtype", "act_dtype", "vmem_cap",
                     "single_buffer_invariants"))
def _normalized_ffn_impl(x, gamma, beta, w1, b1, w2, b2, *, tm, th,
                         matmul_dtype, act_dtype, vmem_cap,
                         single_buffer_invariants):
    S, B, E = x.shape
    H = w1.shape[1]
    M = S * B

    E_pad = _round_up(E, 128)

    # --- row tile: multiple of 8; >= 2 grid steps when possible (v7x 2 TCs).
    tm = max(8, _round_up(tm, 8))
    tm_eff = max(8, min(tm, _round_up(M, 8)))
    if M > 8 and _round_up(M, tm_eff) // tm_eff < 2:
        tm_eff = max(8, _round_up((M + 1) // 2, 8))

    # --- hidden tile: multiple of 128, no larger than the padded hidden dim.
    th = max(128, (th // 128) * 128)
    th_eff = min(th, _round_up(H, 128))

    x_item = jnp.dtype(x.dtype).itemsize
    w_item = jnp.dtype(matmul_dtype).itemsize
    budget = int(vmem_cap * 0.85)

    def plan(tm_e, th_e):
        m_pad = _round_up(M, tm_e)
        h_pad = _round_up(H, th_e)
        nh_ = h_pad // th_e
        n_wbuf = 1 if (single_buffer_invariants and nh_ == 1) else 2
        n_pbuf = 1 if single_buffer_invariants else 2
        est_ = (2 * tm_e * E_pad * x_item               # x tile (2 bufs)
                + 2 * tm_e * E_pad * x_item             # out tile (2 bufs)
                + n_pbuf * 3 * E_pad * 4                # gamma / beta / b2
                + n_wbuf * 2 * E_pad * th_e * w_item    # W1 + W2 slices
                + n_wbuf * th_e * 4                     # b1 slice
                + tm_e * E_pad * 4                      # fc2 accumulator
                + tm_e * E_pad * w_item                 # xn cache
                + tm_e * th_e * 4)                      # fc1 intermediate
        return m_pad, h_pad, nh_, est_

    M_pad, H_pad, nh, est = plan(tm_eff, th_eff)
    # Shrink tiles (hidden first, then rows) until the plan fits the budget.
    while est > budget:
        if th_eff > 128:
            th_eff = max(128, (th_eff // 2) // 128 * 128)
        elif tm_eff > 64:
            tm_eff = max(64, _round_up(tm_eff // 2, 8))
        else:
            break
        M_pad, H_pad, nh, est = plan(tm_eff, th_eff)

    vmem_limit = int(min(max(int(est * 1.4), 16 * 1024 * 1024), budget))

    # --- host-side layout: pad only when actually needed ------------------
    x2d = x.reshape(M, E)
    if M_pad != M or E_pad != E:
        x2d = jnp.pad(x2d, ((0, M_pad - M), (0, E_pad - E)))

    def _vec(v, n, n_pad):
        v2 = v.reshape(1, n).astype(jnp.float32)
        # zero padding is REQUIRED for gamma/beta so padded xn columns stay 0.
        return v2 if n_pad == n else jnp.pad(v2, ((0, 0), (0, n_pad - n)))

    gamma2 = _vec(gamma, E, E_pad)
    beta2 = _vec(beta, E, E_pad)
    b1_2 = _vec(b1, H, H_pad)
    b2_2 = _vec(b2, E, E_pad)

    w1p = w1.astype(matmul_dtype)
    if (E_pad, H_pad) != w1.shape:
        w1p = jnp.pad(w1p, ((0, E_pad - E), (0, H_pad - H)))
    w2p = w2.astype(matmul_dtype)
    if (H_pad, E_pad) != w2.shape:
        w2p = jnp.pad(w2p, ((0, H_pad - H), (0, E_pad - E)))

    # --- specs -------------------------------------------------------------
    def spec(shape, index_map, invariant=False):
        if invariant and single_buffer_invariants and hasattr(pl, "Buffered"):
            # grid-invariant block: one DMA, one buffer.
            return pl.BlockSpec(shape, index_map, pipeline_mode=pl.Buffered(1))
        return pl.BlockSpec(shape, index_map)

    weights_invariant = (nh == 1)

    in_specs = [
        pl.BlockSpec((tm_eff, E_pad), lambda i, h: (i, 0)),                  # x
        spec((1, E_pad), lambda i, h: (0, 0), invariant=True),               # gamma
        spec((1, E_pad), lambda i, h: (0, 0), invariant=True),               # beta
        spec((E_pad, th_eff), lambda i, h: (0, h), invariant=weights_invariant),  # W1
        spec((1, th_eff), lambda i, h: (0, h), invariant=weights_invariant),      # b1
        spec((th_eff, E_pad), lambda i, h: (h, 0), invariant=weights_invariant),  # W2
        spec((1, E_pad), lambda i, h: (0, 0), invariant=True),               # b2
    ]
    out_spec = pl.BlockSpec((tm_eff, E_pad), lambda i, h: (i, 0))

    kernel = functools.partial(_ffn_kernel, e_true=E, e_pad=E_pad,
                               act_dtype=act_dtype)

    out2d = pl.pallas_call(
        kernel,
        out_shape=jax.ShapeDtypeStruct((M_pad, E_pad), x.dtype),
        grid_spec=pltpu.PrefetchScalarGridSpec(
            num_scalar_prefetch=0,
            grid=(M_pad // tm_eff, nh),
            in_specs=in_specs,
            out_specs=out_spec,
            scratch_shapes=[
                pltpu.VMEM((tm_eff, E_pad), jnp.float32),    # fc2 accumulator
                pltpu.VMEM((tm_eff, E_pad), matmul_dtype),   # cached LN output
            ],
        ),
        compiler_params=pltpu.CompilerParams(
            dimension_semantics=("parallel", "arbitrary"),
            vmem_limit_bytes=vmem_limit),
    )(x2d, gamma2, beta2, w1p, b1_2, w2p, b2_2)

    if M_pad != M or E_pad != E:
        out2d = out2d[:M, :E]
    return out2d.reshape(S, B, E)


def _device_config():
    """Generation-aware defaults (VMEM cap, SiLU dtype, tile sizes)."""
    kind = ""
    try:
        kind = jax.devices()[0].device_kind.lower()
    except Exception:
        pass
    vmem_cap = None
    try:
        vmem_cap = int(pltpu.get_tpu_info().vmem_capacity_bytes)
    except Exception:
        pass
    if vmem_cap is None:
        vmem_cap = (64 if "v7" in kind else 128) * 1024 * 1024
    # bf16 VPU/EUP only exists on v6e/v7x; keep SiLU in f32 on older chips.
    old_gen = any(t in kind for t in ("v2", "v3", "v4", "v5"))
    act_dtype = jnp.float32 if old_gen else jnp.bfloat16
    big_vmem = vmem_cap >= 96 * 1024 * 1024
    tm = 512 if big_vmem else 256        # v5e/v6e: 128 MiB VMEM -> bigger tile
    th = 2048 if big_vmem else 1024
    return vmem_cap, act_dtype, tm, th


def normalized_ffn(x, gamma, beta, w1, b1, w2, b2, *, tm=None, th=None,
                   matmul_dtype=jnp.bfloat16):
    """x: (S, B, E). w1: (E, H) pre-transposed; w2: (H, E) pre-transposed.

    Output dtype follows x.dtype (pass bf16 x to halve store/DMA width on v5e).
    Pass matmul_dtype=jnp.float32 for an f32-MXU parity path.
    """
    vmem_cap, act_dtype, tm_auto, th_auto = _device_config()
    if jnp.dtype(matmul_dtype) == jnp.dtype(jnp.float32):
        act_dtype = jnp.float32
    kwargs = dict(tm=int(tm if tm is not None else tm_auto),
                  th=int(th if th is not None else th_auto),
                  matmul_dtype=matmul_dtype, act_dtype=act_dtype,
                  vmem_cap=vmem_cap)
    try:
        return _normalized_ffn_impl(x, gamma, beta, w1, b1, w2, b2,
                                    single_buffer_invariants=True, **kwargs)
    except Exception:
        # Fallback if this JAX build rejects pl.Buffered(1) (single buffering):
        # identical kernel with default double-buffering of invariant operands.
        return _normalized_ffn_impl(x, gamma, beta, w1, b1, w2, b2,
                                    single_buffer_invariants=False, **kwargs)


def reference_ffn(x, gamma, beta, w1, b1, w2, b2):
    xf = x.astype(jnp.float32)
    mean = jnp.mean(xf, axis=-1, keepdims=True)
    var = jnp.mean((xf - mean) ** 2, axis=-1, keepdims=True)
    xn = (xf - mean) / jnp.sqrt(var + LN_EPS) * gamma + beta
    h = xn @ w1 + b1
    h = h * jax.nn.sigmoid(h)
    y = h @ w2 + b2
    return (y + xf).astype(x.dtype)


if __name__ == "__main__":
    # Module hyper-params (small, consistent with __init__):
    seq_len, batch, embed_dim, ffn_hidden_dim = 8, 4, 32, 64

    key = jax.random.PRNGKey(0)
    kx, k1, k2 = jax.random.split(key, 3)

    # Deterministic parameter init mirroring reset_parameters():
    #   fc weights ~ N(0, 0.02), biases = 0, LayerNorm affine = (ones, zeros).
    std = 0.02
    # PyTorch Linear weight is (out, in); store pre-transposed as (in, out).
    w1 = (std * jax.random.normal(k1, (ffn_hidden_dim, embed_dim),
                                  jnp.float32)).T
    b1 = jnp.zeros((ffn_hidden_dim,), jnp.float32)
    w2 = (std * jax.random.normal(k2, (embed_dim, ffn_hidden_dim),
                                  jnp.float32)).T
    b2 = jnp.zeros((embed_dim,), jnp.float32)
    gamma = jnp.ones((embed_dim,), jnp.float32)
    beta = jnp.zeros((embed_dim,), jnp.float32)

    x = jax.random.normal(kx, (seq_len, batch, embed_dim), jnp.float32)

    # TODO(synk): q_route=True branch (GumbelVectorQuantizer routing) is not
    # implemented; the module under test constructs with q_route=False.
    out = jax.block_until_ready(normalized_ffn(x, gamma, beta, w1, b1, w2, b2))
    ref = reference_ffn(x, gamma, beta, w1, b1, w2, b2)

    assert out.shape == x.shape
    # bf16 matmul / activation operands (f32 accumulation, LN, residual) vs
    # a pure-f32 reference.
    assert jnp.allclose(out, ref, atol=1e-2, rtol=1e-2), "mismatch vs reference"

    print("KERNEL_OK")
</pallas_src>

<mosaic_0001>
module attributes {stable_mosaic.version = 11 : i64} {
  func.func @_ffn_kernel(%arg0: i32, %arg1: i32, %arg2: memref<16x128xf32, #tpu.memory_space<vmem>>, %arg3: memref<1x128xf32, #tpu.memory_space<vmem>>, %arg4: memref<1x128xf32, #tpu.memory_space<vmem>>, %arg5: memref<128x128xbf16, #tpu.memory_space<vmem>>, %arg6: memref<1x128xf32, #tpu.memory_space<vmem>>, %arg7: memref<128x128xbf16, #tpu.memory_space<vmem>>, %arg8: memref<1x128xf32, #tpu.memory_space<vmem>>, %arg9: memref<16x128xf32, #tpu.memory_space<vmem>>, %arg10: memref<16x128xf32, #tpu.memory_space<vmem>>, %arg11: memref<16x128xbf16, #tpu.memory_space<vmem>>) attributes {dimension_semantics = [#tpu.dimension_semantics<parallel>, #tpu.dimension_semantics<arbitrary>], iteration_bounds = array<i64: 2, 1>, scalar_prefetch = 0 : i64, scratch_operands = 2 : i64, tpu.core_type = #tpu.core_type<tc>, window_params = [{transform_indices = @transform_0, window_bounds = array<i64: 16, 128>}, {pipeline_mode = #tpu.pipeline_mode<synchronous>, transform_indices = @transform_1, window_bounds = array<i64: 1, 128>}, {pipeline_mode = #tpu.pipeline_mode<synchronous>, transform_indices = @transform_2, window_bounds = array<i64: 1, 128>}, {pipeline_mode = #tpu.pipeline_mode<synchronous>, transform_indices = @transform_3, window_bounds = array<i64: 128, 128>}, {pipeline_mode = #tpu.pipeline_mode<synchronous>, transform_indices = @transform_4, window_bounds = array<i64: 1, 128>}, {pipeline_mode = #tpu.pipeline_mode<synchronous>, transform_indices = @transform_5, window_bounds = array<i64: 128, 128>}, {pipeline_mode = #tpu.pipeline_mode<synchronous>, transform_indices = @transform_6, window_bounds = array<i64: 1, 128>}, {transform_indices = @transform_7, window_bounds = array<i64: 16, 128>}]} {
    %c0_i32 = arith.constant 0 : i32
    %0 = arith.cmpi eq, %arg1, %c0_i32 : i32
    %1 = arith.extui %0 : i1 to i32
    %c0_i32_0 = arith.constant 0 : i32
    %2 = arith.cmpi ne, %1, %c0_i32_0 : i32
    scf.if %2 {
      %c0_16 = arith.constant 0 : index
      %c0_17 = arith.constant 0 : index
      %24 = vector.load %arg2[%c0_16, %c0_17] : memref<16x128xf32, #tpu.memory_space<vmem>>, vector<16x128xf32>
      %cst_18 = arith.constant dense<0.000000e+00> : vector<16xf32>
      %25 = vector.multi_reduction <add>, %24, %cst_18 [1] : vector<16x128xf32> to vector<16xf32>
      %26 = vector.shape_cast %25 : vector<16xf32> to vector<16x1xf32>
      %cst_19 = arith.constant 3.125000e-02 : f32
      %27 = vector.broadcast %cst_19 : f32 to vector<16x1xf32>
      %28 = arith.mulf %26, %27 : vector<16x1xf32>
      %29 = vector.broadcast %28 : vector<16x1xf32> to vector<16x128xf32>
      %30 = arith.subf %24, %29 : vector<16x128xf32>
      %31 = arith.mulf %30, %30 : vector<16x128xf32>
      %cst_20 = arith.constant dense<0.000000e+00> : vector<16xf32>
      %32 = vector.multi_reduction <add>, %31, %cst_20 [1] : vector<16x128xf32> to vector<16xf32>
      %33 = vector.shape_cast %32 : vector<16xf32> to vector<16x1xf32>
      %34 = arith.mulf %28, %28 : vector<16x1xf32>
      %cst_21 = arith.constant 9.600000e+01 : f32
      %35 = vector.broadcast %cst_21 : f32 to vector<16x1xf32>
      %36 = arith.mulf %35, %34 : vector<16x1xf32>
      %37 = arith.subf %33, %36 : vector<16x1xf32>
      %cst_22 = arith.constant 3.125000e-02 : f32
      %38 = vector.broadcast %cst_22 : f32 to vector<16x1xf32>
      %39 = arith.mulf %37, %38 : vector<16x1xf32>
      %cst_23 = arith.constant 9.99999974E-6 : f32
      %40 = vector.broadcast %cst_23 : f32 to vector<16x1xf32>
      %41 = arith.addf %39, %40 : vector<16x1xf32>
      %42 = math.rsqrt %41 : vector<16x1xf32>
      %43 = vector.broadcast %42 : vector<16x1xf32> to vector<16x128xf32>
      %44 = arith.mulf %30, %43 : vector<16x128xf32>
      %c0_24 = arith.constant 0 : index
      %c0_25 = arith.constant 0 : index
      %45 = vector.load %arg3[%c0_24, %c0_25] : memref<1x128xf32, #tpu.memory_space<vmem>>, vector<1x128xf32>
      %46 = vector.broadcast %45 : vector<1x128xf32> to vector<16x128xf32>
      %47 = arith.mulf %44, %46 : vector<16x128xf32>
      %c0_26 = arith.constant 0 : index
      %c0_27 = arith.constant 0 : index
      %48 = vector.load %arg4[%c0_26, %c0_27] : memref<1x128xf32, #tpu.memory_space<vmem>>, vector<1x128xf32>
      %49 = vector.broadcast %48 : vector<1x128xf32> to vector<16x128xf32>
      %50 = arith.addf %47, %49 : vector<16x128xf32>
      %51 = arith.truncf %50 : vector<16x128xf32> to vector<16x128xbf16>
      %c0_28 = arith.constant 0 : index
      %c0_29 = arith.constant 0 : index
      %52 = vector.load %arg11[%c0_28, %c0_29] : memref<16x128xbf16, #tpu.memory_space<vmem>>, vector<16x128xbf16>
      tpu.vector_store %arg11[%c0_28, %c0_29], %51 {strides = array<i32>} : memref<16x128xbf16, #tpu.memory_space<vmem>>, vector<16x128xbf16>,
      %cst_30 = arith.constant 0.000000e+00 : f32
      %53 = vector.broadcast %cst_30 : f32 to vector<16x128xf32>
      %c0_31 = arith.constant 0 : index
      %c0_32 = arith.constant 0 : index
      %54 = vector.load %arg10[%c0_31, %c0_32] : memref<16x128xf32, #tpu.memory_space<vmem>>, vector<16x128xf32>
      tpu.vector_store %arg10[%c0_31, %c0_32], %53 {strides = array<i32>} : memref<16x128xf32, #tpu.memory_space<vmem>>, vector<16x128xf32>,
    } else {
    }
    %c0 = arith.constant 0 : index
    %c0_1 = arith.constant 0 : index
    %3 = vector.load %arg11[%c0, %c0_1] : memref<16x128xbf16, #tpu.memory_space<vmem>>, vector<16x128xbf16>
    %c0_2 = arith.constant 0 : index
    %c0_3 = arith.constant 0 : index
    %4 = vector.load %arg5[%c0_2, %c0_3] : memref<128x128xbf16, #tpu.memory_space<vmem>>, vector<128x128xbf16>
    %cst = arith.constant dense<0.000000e+00> : vector<16x128xf32>
    %5 = tpu.matmul %3, %4, %cst {dimension_numbers = #tpu.dot_dimension_numbers<[1], [0], [0], [1], [0, 0, 1, 1], [], []>} : vector<16x128xbf16>, vector<128x128xbf16>, vector<16x128xf32> -> vector<16x128xf32>
    %c0_4 = arith.constant 0 : index
    %c0_5 = arith.constant 0 : index
    %6 = vector.load %arg6[%c0_4, %c0_5] : memref<1x128xf32, #tpu.memory_space<vmem>>, vector<1x128xf32>
    %7 = vector.broadcast %6 : vector<1x128xf32> to vector<16x128xf32>
    %8 = arith.addf %5, %7 : vector<16x128xf32>
    %9 = arith.truncf %8 : vector<16x128xf32> to vector<16x128xbf16>
    %10 = arith.negf %9 : vector<16x128xbf16>
    %11 = math.exp %10 : vector<16x128xbf16>
    %cst_6 = arith.constant 1.000000e+00 : bf16
    %12 = vector.broadcast %cst_6 : bf16 to vector<16x128xbf16>
    %13 = arith.addf %12, %11 : vector<16x128xbf16>
    %14 = arith.divf %12, %13 : vector<16x128xbf16>
    %15 = arith.mulf %9, %14 : vector<16x128xbf16>
    %c0_7 = arith.constant 0 : index
    %c0_8 = arith.constant 0 : index
    %16 = vector.load %arg10[%c0_7, %c0_8] : memref<16x128xf32, #tpu.memory_space<vmem>>, vector<16x128xf32>
    %c0_9 = arith.constant 0 : index
    %c0_10 = arith.constant 0 : index
    %17 = vector.load %arg7[%c0_9, %c0_10] : memref<128x128xbf16, #tpu.memory_space<vmem>>, vector<128x128xbf16>
    %cst_11 = arith.constant dense<0.000000e+00> : vector<16x128xf32>
    %18 = tpu.matmul %15, %17, %cst_11 {dimension_numbers = #tpu.dot_dimension_numbers<[1], [0], [0], [1], [0, 0, 1, 1], [], []>} : vector<16x128xbf16>, vector<128x128xbf16>, vector<16x128xf32> -> vector<16x128xf32>
    %19 = arith.addf %16, %18 : vector<16x128xf32>
    %c0_12 = arith.constant 0 : index
    %c0_13 = arith.constant 0 : index
    %20 = vector.load %arg10[%c0_12, %c0_13] : memref<16x128xf32, #tpu.memory_space<vmem>>, vector<16x128xf32>
    tpu.vector_store %arg10[%c0_12, %c0_13], %19 {strides = array<i32>} : memref<16x128xf32, #tpu.memory_space<vmem>>, vector<16x128xf32>,
    %c0_i32_14 = arith.constant 0 : i32
    %21 = arith.cmpi eq, %arg1, %c0_i32_14 : i32
    %22 = arith.extui %21 : i1 to i32
    %c0_i32_15 = arith.constant 0 : i32
    %23 = arith.cmpi ne, %22, %c0_i32_15 : i32
    scf.if %23 {
      %c0_16 = arith.constant 0 : index
      %c0_17 = arith.constant 0 : index
      %24 = vector.load %arg10[%c0_16, %c0_17] : memref<16x128xf32, #tpu.memory_space<vmem>>, vector<16x128xf32>
      %c0_18 = arith.constant 0 : index
      %c0_19 = arith.constant 0 : index
      %25 = vector.load %arg8[%c0_18, %c0_19] : memref<1x128xf32, #tpu.memory_space<vmem>>, vector<1x128xf32>
      %26 = vector.broadcast %25 : vector<1x128xf32> to vector<16x128xf32>
      %27 = arith.addf %24, %26 : vector<16x128xf32>
      %c0_20 = arith.constant 0 : index
      %c0_21 = arith.constant 0 : index
      %28 = vector.load %arg2[%c0_20, %c0_21] : memref<16x128xf32, #tpu.memory_space<vmem>>, vector<16x128xf32>
      %29 = arith.addf %27, %28 : vector<16x128xf32>
      %c0_22 = arith.constant 0 : index
      %c0_23 = arith.constant 0 : index
      %30 = vector.load %arg9[%c0_22, %c0_23] : memref<16x128xf32, #tpu.memory_space<vmem>>, vector<16x128xf32>
      tpu.vector_store %arg9[%c0_22, %c0_23], %29 {strides = array<i32>} : memref<16x128xf32, #tpu.memory_space<vmem>>, vector<16x128xf32>,
    } else {
    }
    return
  }
  func.func @transform_0(%arg0: i32, %arg1: i32) -> (i32, i32) {
    %c0_i32 = arith.constant 0 : i32
    %c0_i32_0 = arith.constant 0 : i32
    return %arg0, %c0_i32 : i32, i32
  }
  func.func @transform_1(%arg0: i32, %arg1: i32) -> (i32, i32) {
    %c0_i32 = arith.constant 0 : i32
    %c0_i32_0 = arith.constant 0 : i32
    %c0_i32_1 = arith.constant 0 : i32
    return %c0_i32, %c0_i32_0 : i32, i32
  }
  func.func @transform_2(%arg0: i32, %arg1: i32) -> (i32, i32) {
    %c0_i32 = arith.constant 0 : i32
    %c0_i32_0 = arith.constant 0 : i32
    %c0_i32_1 = arith.constant 0 : i32
    return %c0_i32, %c0_i32_0 : i32, i32
  }
  func.func @transform_3(%arg0: i32, %arg1: i32) -> (i32, i32) {
    %c0_i32 = arith.constant 0 : i32
    %c0_i32_0 = arith.constant 0 : i32
    return %c0_i32, %arg1 : i32, i32
  }
  func.func @transform_4(%arg0: i32, %arg1: i32) -> (i32, i32) {
    %c0_i32 = arith.constant 0 : i32
    %c0_i32_0 = arith.constant 0 : i32
    return %c0_i32, %arg1 : i32, i32
  }
  func.func @transform_5(%arg0: i32, %arg1: i32) -> (i32, i32) {
    %c0_i32 = arith.constant 0 : i32
    %c0_i32_0 = arith.constant 0 : i32
    return %arg1, %c0_i32 : i32, i32
  }
  func.func @transform_6(%arg0: i32, %arg1: i32) -> (i32, i32) {
    %c0_i32 = arith.constant 0 : i32
    %c0_i32_0 = arith.constant 0 : i32
    %c0_i32_1 = arith.constant 0 : i32
    return %c0_i32, %c0_i32_0 : i32, i32
  }
  func.func @transform_7(%arg0: i32, %arg1: i32) -> (i32, i32) {
    %c0_i32 = arith.constant 0 : i32
    %c0_i32_0 = arith.constant 0 : i32
    return %arg0, %c0_i32 : i32, i32
  }
}

module attributes {stable_mosaic.version = 11 : i64} {
  func.func @_ffn_kernel(%arg0: i32, %arg1: i32, %arg2: memref<16x128xf32, #tpu.memory_space<vmem>>, %arg3: memref<1x128xf32, #tpu.memory_space<vmem>>, %arg4: memref<1x128xf32, #tpu.memory_space<vmem>>, %arg5: memref<128x128xbf16, #tpu.memory_space<vmem>>, %arg6: memref<1x128xf32, #tpu.memory_space<vmem>>, %arg7: memref<128x128xbf16, #tpu.memory_space<vmem>>, %arg8: memref<1x128xf32, #tpu.memory_space<vmem>>, %arg9: memref<16x128xf32, #tpu.memory_space<vmem>>, %arg10: memref<16x128xf32, #tpu.memory_space<vmem>>, %arg11: memref<16x128xbf16, #tpu.memory_space<vmem>>) attributes {dimension_semantics = [#tpu.dimension_semantics<parallel>, #tpu.dimension_semantics<arbitrary>], iteration_bounds = array<i64: 2, 1>, scalar_prefetch = 0 : i64, scratch_operands = 2 : i64, tpu.core_type = #tpu.core_type<tc>, window_params = [{transform_indices = @transform_0, window_bounds = array<i64: 16, 128>}, {pipeline_mode = #tpu.pipeline_mode<synchronous>, transform_indices = @transform_1, window_bounds = array<i64: 1, 128>}, {pipeline_mode = #tpu.pipeline_mode<synchronous>, transform_indices = @transform_2, window_bounds = array<i64: 1, 128>}, {transform_indices = @transform_3, window_bounds = array<i64: 128, 128>}, {transform_indices = @transform_4, window_bounds = array<i64: 1, 128>}, {transform_indices = @transform_5, window_bounds = array<i64: 128, 128>}, {pipeline_mode = #tpu.pipeline_mode<synchronous>, transform_indices = @transform_6, window_bounds = array<i64: 1, 128>}, {transform_indices = @transform_7, window_bounds = array<i64: 16, 128>}]} {
    %c0_i32 = arith.constant 0 : i32
    %0 = arith.cmpi eq, %arg1, %c0_i32 : i32
    %1 = arith.extui %0 : i1 to i32
    %c0_i32_0 = arith.constant 0 : i32
    %2 = arith.cmpi ne, %1, %c0_i32_0 : i32
    scf.if %2 {
      %c0_16 = arith.constant 0 : index
      %c0_17 = arith.constant 0 : index
      %24 = vector.load %arg2[%c0_16, %c0_17] : memref<16x128xf32, #tpu.memory_space<vmem>>, vector<16x128xf32>
      %cst_18 = arith.constant dense<0.000000e+00> : vector<16xf32>
      %25 = vector.multi_reduction <add>, %24, %cst_18 [1] : vector<16x128xf32> to vector<16xf32>
      %26 = vector.shape_cast %25 : vector<16xf32> to vector<16x1xf32>
      %cst_19 = arith.constant 3.125000e-02 : f32
      %27 = vector.broadcast %cst_19 : f32 to vector<16x1xf32>
      %28 = arith.mulf %26, %27 : vector<16x1xf32>
      %29 = vector.broadcast %28 : vector<16x1xf32> to vector<16x128xf32>
      %30 = arith.subf %24, %29 : vector<16x128xf32>
      %31 = arith.mulf %30, %30 : vector<16x128xf32>
      %cst_20 = arith.constant dense<0.000000e+00> : vector<16xf32>
      %32 = vector.multi_reduction <add>, %31, %cst_20 [1] : vector<16x128xf32> to vector<16xf32>
      %33 = vector.shape_cast %32 : vector<16xf32> to vector<16x1xf32>
      %34 = arith.mulf %28, %28 : vector<16x1xf32>
      %cst_21 = arith.constant 9.600000e+01 : f32
      %35 = vector.broadcast %cst_21 : f32 to vector<16x1xf32>
      %36 = arith.mulf %35, %34 : vector<16x1xf32>
      %37 = arith.subf %33, %36 : vector<16x1xf32>
      %cst_22 = arith.constant 3.125000e-02 : f32
      %38 = vector.broadcast %cst_22 : f32 to vector<16x1xf32>
      %39 = arith.mulf %37, %38 : vector<16x1xf32>
      %cst_23 = arith.constant 9.99999974E-6 : f32
      %40 = vector.broadcast %cst_23 : f32 to vector<16x1xf32>
      %41 = arith.addf %39, %40 : vector<16x1xf32>
      %42 = math.rsqrt %41 : vector<16x1xf32>
      %43 = vector.broadcast %42 : vector<16x1xf32> to vector<16x128xf32>
      %44 = arith.mulf %30, %43 : vector<16x128xf32>
      %c0_24 = arith.constant 0 : index
      %c0_25 = arith.constant 0 : index
      %45 = vector.load %arg3[%c0_24, %c0_25] : memref<1x128xf32, #tpu.memory_space<vmem>>, vector<1x128xf32>
      %46 = vector.broadcast %45 : vector<1x128xf32> to vector<16x128xf32>
      %47 = arith.mulf %44, %46 : vector<16x128xf32>
      %c0_26 = arith.constant 0 : index
      %c0_27 = arith.constant 0 : index
      %48 = vector.load %arg4[%c0_26, %c0_27] : memref<1x128xf32, #tpu.memory_space<vmem>>, vector<1x128xf32>
      %49 = vector.broadcast %48 : vector<1x128xf32> to vector<16x128xf32>
      %50 = arith.addf %47, %49 : vector<16x128xf32>
      %51 = arith.truncf %50 : vector<16x128xf32> to vector<16x128xbf16>
      %c0_28 = arith.constant 0 : index
      %c0_29 = arith.constant 0 : index
      %52 = vector.load %arg11[%c0_28, %c0_29] : memref<16x128xbf16, #tpu.memory_space<vmem>>, vector<16x128xbf16>
      tpu.vector_store %arg11[%c0_28, %c0_29], %51 {strides = array<i32>} : memref<16x128xbf16, #tpu.memory_space<vmem>>, vector<16x128xbf16>,
      %cst_30 = arith.constant 0.000000e+00 : f32
      %53 = vector.broadcast %cst_30 : f32 to vector<16x128xf32>
      %c0_31 = arith.constant 0 : index
      %c0_32 = arith.constant 0 : index
      %54 = vector.load %arg10[%c0_31, %c0_32] : memref<16x128xf32, #tpu.memory_space<vmem>>, vector<16x128xf32>
      tpu.vector_store %arg10[%c0_31, %c0_32], %53 {strides = array<i32>} : memref<16x128xf32, #tpu.memory_space<vmem>>, vector<16x128xf32>,
    } else {
    }
    %c0 = arith.constant 0 : index
    %c0_1 = arith.constant 0 : index
    %3 = vector.load %arg11[%c0, %c0_1] : memref<16x128xbf16, #tpu.memory_space<vmem>>, vector<16x128xbf16>
    %c0_2 = arith.constant 0 : index
    %c0_3 = arith.constant 0 : index
    %4 = vector.load %arg5[%c0_2, %c0_3] : memref<128x128xbf16, #tpu.memory_space<vmem>>, vector<128x128xbf16>
    %cst = arith.constant dense<0.000000e+00> : vector<16x128xf32>
    %5 = tpu.matmul %3, %4, %cst {dimension_numbers = #tpu.dot_dimension_numbers<[1], [0], [0], [1], [0, 0, 1, 1], [], []>} : vector<16x128xbf16>, vector<128x128xbf16>, vector<16x128xf32> -> vector<16x128xf32>
    %c0_4 = arith.constant 0 : index
    %c0_5 = arith.constant 0 : index
    %6 = vector.load %arg6[%c0_4, %c0_5] : memref<1x128xf32, #tpu.memory_space<vmem>>, vector<1x128xf32>
    %7 = vector.broadcast %6 : vector<1x128xf32> to vector<16x128xf32>
    %8 = arith.addf %5, %7 : vector<16x128xf32>
    %9 = arith.truncf %8 : vector<16x128xf32> to vector<16x128xbf16>
    %10 = arith.negf %9 : vector<16x128xbf16>
    %11 = math.exp %10 : vector<16x128xbf16>
    %cst_6 = arith.constant 1.000000e+00 : bf16
    %12 = vector.broadcast %cst_6 : bf16 to vector<16x128xbf16>
    %13 = arith.addf %12, %11 : vector<16x128xbf16>
    %14 = arith.divf %12, %13 : vector<16x128xbf16>
    %15 = arith.mulf %9, %14 : vector<16x128xbf16>
    %c0_7 = arith.constant 0 : index
    %c0_8 = arith.constant 0 : index
    %16 = vector.load %arg10[%c0_7, %c0_8] : memref<16x128xf32, #tpu.memory_space<vmem>>, vector<16x128xf32>
    %c0_9 = arith.constant 0 : index
    %c0_10 = arith.constant 0 : index
    %17 = vector.load %arg7[%c0_9, %c0_10] : memref<128x128xbf16, #tpu.memory_space<vmem>>, vector<128x128xbf16>
    %cst_11 = arith.constant dense<0.000000e+00> : vector<16x128xf32>
    %18 = tpu.matmul %15, %17, %cst_11 {dimension_numbers = #tpu.dot_dimension_numbers<[1], [0], [0], [1], [0, 0, 1, 1], [], []>} : vector<16x128xbf16>, vector<128x128xbf16>, vector<16x128xf32> -> vector<16x128xf32>
    %19 = arith.addf %16, %18 : vector<16x128xf32>
    %c0_12 = arith.constant 0 : index
    %c0_13 = arith.constant 0 : index
    %20 = vector.load %arg10[%c0_12, %c0_13] : memref<16x128xf32, #tpu.memory_space<vmem>>, vector<16x128xf32>
    tpu.vector_store %arg10[%c0_12, %c0_13], %19 {strides = array<i32>} : memref<16x128xf32, #tpu.memory_space<vmem>>, vector<16x128xf32>,
    %c0_i32_14 = arith.constant 0 : i32
    %21 = arith.cmpi eq, %arg1, %c0_i32_14 : i32
    %22 = arith.extui %21 : i1 to i32
    %c0_i32_15 = arith.constant 0 : i32
    %23 = arith.cmpi ne, %22, %c0_i32_15 : i32
    scf.if %23 {
      %c0_16 = arith.constant 0 : index
      %c0_17 = arith.constant 0 : index
      %24 = vector.load %arg10[%c0_16, %c0_17] : memref<16x128xf32, #tpu.memory_space<vmem>>, vector<16x128xf32>
      %c0_18 = arith.constant 0 : index
      %c0_19 = arith.constant 0 : index
      %25 = vector.load %arg8[%c0_18, %c0_19] : memref<1x128xf32, #tpu.memory_space<vmem>>, vector<1x128xf32>
      %26 = vector.broadcast %25 : vector<1x128xf32> to vector<16x128xf32>
      %27 = arith.addf %24, %26 : vector<16x128xf32>
      %c0_20 = arith.constant 0 : index
      %c0_21 = arith.constant 0 : index
      %28 = vector.load %arg2[%c0_20, %c0_21] : memref<16x128xf32, #tpu.memory_space<vmem>>, vector<16x128xf32>
      %29 = arith.addf %27, %28 : vector<16x128xf32>
      %c0_22 = arith.constant 0 : index
      %c0_23 = arith.constant 0 : index
      %30 = vector.load %arg9[%c0_22, %c0_23] : memref<16x128xf32, #tpu.memory_space<vmem>>, vector<16x128xf32>
      tpu.vector_store %arg9[%c0_22, %c0_23], %29 {strides = array<i32>} : memref<16x128xf32, #tpu.memory_space<vmem>>, vector<16x128xf32>,
    } else {
    }
    return
  }
  func.func @transform_0(%arg0: i32, %arg1: i32) -> (i32, i32) {
    %c0_i32 = arith.constant 0 : i32
    %c0_i32_0 = arith.constant 0 : i32
    return %arg0, %c0_i32 : i32, i32
  }
  func.func @transform_1(%arg0: i32, %arg1: i32) -> (i32, i32) {
    %c0_i32 = arith.constant 0 : i32
    %c0_i32_0 = arith.constant 0 : i32
    %c0_i32_1 = arith.constant 0 : i32
    return %c0_i32, %c0_i32_0 : i32, i32
  }
  func.func @transform_2(%arg0: i32, %arg1: i32) -> (i32, i32) {
    %c0_i32 = arith.constant 0 : i32
    %c0_i32_0 = arith.constant 0 : i32
    %c0_i32_1 = arith.constant 0 : i32
    return %c0_i32, %c0_i32_0 : i32, i32
  }
  func.func @transform_3(%arg0: i32, %arg1: i32) -> (i32, i32) {
    %c0_i32 = arith.constant 0 : i32
    %c0_i32_0 = arith.constant 0 : i32
    return %c0_i32, %arg1 : i32, i32
  }
  func.func @transform_4(%arg0: i32, %arg1: i32) -> (i32, i32) {
    %c0_i32 = arith.constant 0 : i32
    %c0_i32_0 = arith.constant 0 : i32
    return %c0_i32, %arg1 : i32, i32
  }
  func.func @transform_5(%arg0: i32, %arg1: i32) -> (i32, i32) {
    %c0_i32 = arith.constant 0 : i32
    %c0_i32_0 = arith.constant 0 : i32
    return %arg1, %c0_i32 : i32, i32
  }
  func.func @transform_6(%arg0: i32, %arg1: i32) -> (i32, i32) {
    %c0_i32 = arith.constant 0 : i32
    %c0_i32_0 = arith.constant 0 : i32
    %c0_i32_1 = arith.constant 0 : i32
    return %c0_i32, %c0_i32_0 : i32, i32
  }
  func.func @transform_7(%arg0: i32, %arg1: i32) -> (i32, i32) {
    %c0_i32 = arith.constant 0 : i32
    %c0_i32_0 = arith.constant 0 : i32
    return %arg0, %c0_i32 : i32, i32
  }
}

</mosaic_0001>

<llo_original>
// kernel: _normalized_ffn_impl.1
$region0: #{_normalized_ffn_impl.1}
  #allocation0 [shape = 'u32[]', space=smem, size = 0x4, offset = 0x4, fixed_abs, tag = 'smem constant byte address 0x4 - core index']
  #allocation1 [shape = 'u32[144,128]{1,0:T(1,128)}', space=vmem, size = 0x12000, scoped, tag = 'internal scratch']
  #allocation2 [shape = 'f32[16,128]{1,0:T(8,128)}', space=vmem, size = 0x2000, scoped, tag = 'scratch operand']
  #allocation3 [shape = 'bf16[16,128]{1,0:T(8,128)(2,1)}', space=vmem, size = 0x1000, scoped, tag = 'scratch operand']
  %s0 = inlined_call_operand.vmem [shape: f32[32,128], index: 0, kind: input, shape index: {}]
  %s1 = inlined_call_operand.vmem [shape: f32[1,128], index: 1, kind: input, shape index: {}]
  %s2 = inlined_call_operand.vmem [shape: f32[1,128], index: 2, kind: input, shape index: {}]
  %s3 = inlined_call_operand.vmem [shape: bf16[128,128], index: 3, kind: input, shape index: {}]
  %s4 = inlined_call_operand.vmem [shape: f32[1,128], index: 4, kind: input, shape index: {}]
  %s5 = inlined_call_operand.vmem [shape: bf16[128,128], index: 5, kind: input, shape index: {}]
  %s6 = inlined_call_operand.vmem [shape: f32[1,128], index: 6, kind: input, shape index: {}]
  %s7 = inlined_call_operand.hbm [shape: f32[32,128], index: 7, kind: output, shape index: {}]
  %s8 = sld [smem:[#allocation0]]
  $region69: #{_normalized_ffn_impl.1} parent=0
    _
  %s10 = ssub.s32 1, %s8
  %s11 = scalar_select 0, %s10, %s8
  $region1: #{_normalized_ffn_impl.1} parent=0
    #allocation4 [shape = 'u8[16384]{0}', space=vmem, size = 0x4000, scoped, tag = 'output window, operand 0']
    #allocation5 [shape = 's32[2]{0}', space=sflag, size = 0x8, scoped, tag = 'scoped memory for _normalized_ffn_impl.1']
    %12 = vsyncpa [#allocation5], 0
    %s13 = scalar_lea.sflag [#allocation5], 1
    %14 = vsyncpa %s13, 0
    loop: start=0, step=1, limit=4
    $region2: #{_normalized_ffn_impl.1} parent=1 // loop_pre_header
      _
    $region3: #{_normalized_ffn_impl.1} parent=1 // loop_header
      %s16 = sphi 0, %s20
      %p17 = scmp.ge.s32.totalorder %s16, 4
      %s23 = sphi 0, %s35
      %s24 = sphi 0, %s31
      %s25 = sphi 0, %s23
      %s26 = sphi 0, %s24
      %s27 = sphi 0, %s25
      %s28 = sphi 0, %s26
      %s38 = sphi 0, %s40
      %s41 = sphi 0, %s38
      %s42 = sphi 0, %s41
      %s58 = sphi 0, %s42
      %s62 = sphi 0, %s62
      %s64 = sphi 0, %s62
      %s65 = sphi 0, %s64
      %s79 = sphi 0, %s65
      %s83 = sphi 0, %s83
      %s85 = sphi 0, %s83
      %s86 = sphi 0, %s85
      %s100 = sphi 0, %s86
      %s106 = sphi 0, %s108
      %s109 = sphi 0, %s106
      %s110 = sphi 0, %s109
      %s126 = sphi 0, %s110
      %s132 = sphi 0, %s134
      %s135 = sphi 0, %s132
      %s136 = sphi 0, %s135
      %s152 = sphi 0, %s136
      %s158 = sphi 0, %s160
      %s161 = sphi 0, %s158
      %s162 = sphi 0, %s161
      %s178 = sphi 0, %s162
      %s182 = sphi 0, %s182
      %s184 = sphi 0, %s182
      %s185 = sphi 0, %s184
      %s199 = sphi 0, %s185
      %s205 = sphi 0, %s207
      %s208 = sphi 0, %s205
      %s209 = sphi 0, %s208
      %s225 = sphi 0, %s209
    $region4: #{_normalized_ffn_impl.1} parent=1 // loop_header_branch
      %19 = sbr.rel (%p17) target = $region8
    $region5: #{_normalized_ffn_impl.1} parent=1 // loop_body
      %s21 = ssub.s32 %s16, 1
      %s22 = ssub.s32 %s16, 2
      %s29 = sadd.s32 1, %s24
      %p30 = scmp.ge.s32.totalorder %s29, 1
      %s31 = scalar_select %p30, 0, %s29
      %s32 = sadd.s32 1, %s23
      %s33 = scalar_select %p30, %s32, %s23
      %p34 = scmp.ge.s32.totalorder %s33, 2
      %s35 = scalar_select %p34, 0, %s33
      %s36 = ssub.s32 %s23, %s35
      %p37 = scmp.eq.s32.totalorder %s36, 0
      %s39 = sadd.s32 %s38, 1
      %s40 = scalar_select %p37, %s38, %s39
      %p43 = pneg %p37
      %p44 = scmp.eq.s32.totalorder %s16, 1
      %p45 = por %p43, %p44
      %p46 = scmp.ne.s32.totalorder %s38, %s41
      %p47 = scmp.eq.s32.totalorder %s16, 0
      %p48 = por %p46, %p47
      %p49 = scmp.ne.s32.totalorder %s38, %s41
      %p50 = scmp.eq.s32.totalorder %s21, 1
      %p51 = por %p49, %p50
      %p52 = scmp.ne.s32.totalorder %s41, %s42
      %p53 = scmp.eq.s32.totalorder %s21, 0
      %p54 = por %p52, %p53
      %p55 = scmp.ne.s32.totalorder %s41, %s42
      %p56 = scmp.eq.s32.totalorder %s22, 1
      %p57 = por %p55, %p56
      %p59 = scmp.ne.s32.totalorder %s42, %s58
      %p60 = scmp.eq.s32.totalorder %s22, 0
      %p61 = por %p59, %p60
      %s63 = sadd.s32 %s62, 1
      %p66 = scmp.eq.s32.totalorder %s16, 1
      %p67 = scmp.ne.s32.totalorder %s62, %s64
      %p68 = scmp.eq.s32.totalorder %s16, 0
      %p69 = por %p67, %p68
      %p70 = scmp.ne.s32.totalorder %s62, %s64
      %p71 = scmp.eq.s32.totalorder %s21, 1
      %p72 = por %p70, %p71
      %p73 = scmp.ne.s32.totalorder %s64, %s65
      %p74 = scmp.eq.s32.totalorder %s21, 0
      %p75 = por %p73, %p74
      %p76 = scmp.ne.s32.totalorder %s64, %s65
      %p77 = scmp.eq.s32.totalorder %s22, 1
      %p78 = por %p76, %p77
      %p80 = scmp.ne.s32.totalorder %s65, %s79
      %p81 = scmp.eq.s32.totalorder %s22, 0
      %p82 = por %p80, %p81
      %s84 = sadd.s32 %s83, 1
      %p87 = scmp.eq.s32.totalorder %s16, 1
      %p88 = scmp.ne.s32.totalorder %s83, %s85
      %p89 = scmp.eq.s32.totalorder %s16, 0
      %p90 = por %p88, %p89
      %p91 = scmp.ne.s32.totalorder %s83, %s85
      %p92 = scmp.eq.s32.totalorder %s21, 1
      %p93 = por %p91, %p92
      %p94 = scmp.ne.s32.totalorder %s85, %s86
      %p95 = scmp.eq.s32.totalorder %s21, 0
      %p96 = por %p94, %p95
      %p97 = scmp.ne.s32.totalorder %s85, %s86
      %p98 = scmp.eq.s32.totalorder %s22, 1
      %p99 = por %p97, %p98
      %p101 = scmp.ne.s32.totalorder %s86, %s100
      %p102 = scmp.eq.s32.totalorder %s22, 0
      %p103 = por %p101, %p102
      %s104 = ssub.s32 %s24, %s31
      %p105 = scmp.eq.s32.totalorder %s104, 0
      %s107 = sadd.s32 %s106, 1
      %s108 = scalar_select %p105, %s106, %s107
      %p111 = pneg %p105
      %p112 = scmp.eq.s32.totalorder %s16, 1
      %p113 = por %p111, %p112
      %p114 = scmp.ne.s32.totalorder %s106, %s109
      %p115 = scmp.eq.s32.totalorder %s16, 0
      %p116 = por %p114, %p115
      %p117 = scmp.ne.s32.totalorder %s106, %s109
      %p118 = scmp.eq.s32.totalorder %s21, 1
      %p119 = por %p117, %p118
      %p120 = scmp.ne.s32.totalorder %s109, %s110
      %p121 = scmp.eq.s32.totalorder %s21, 0
      %p122 = por %p120, %p121
      %p123 = scmp.ne.s32.totalorder %s109, %s110
      %p124 = scmp.eq.s32.totalorder %s22, 1
      %p125 = por %p123, %p124
      %p127 = scmp.ne.s32.totalorder %s110, %s126
      %p128 = scmp.eq.s32.totalorder %s22, 0
      %p129 = por %p127, %p128
      %s130 = ssub.s32 %s24, %s31
      %p131 = scmp.eq.s32.totalorder %s130, 0
      %s133 = sadd.s32 %s132, 1
      %s134 = scalar_select %p131, %s132, %s133
      %p137 = pneg %p131
      %p138 = scmp.eq.s32.totalorder %s16, 1
      %p139 = por %p137, %p138
      %p140 = scmp.ne.s32.totalorder %s132, %s135
      %p141 = scmp.eq.s32.totalorder %s16, 0
      %p142 = por %p140, %p141
      %p143 = scmp.ne.s32.totalorder %s132, %s135
      %p144 = scmp.eq.s32.totalorder %s21, 1
      %p145 = por %p143, %p144
      %p146 = scmp.ne.s32.totalorder %s135, %s136
      %p147 = scmp.eq.s32.totalorder %s21, 0
      %p148 = por %p146, %p147
      %p149 = scmp.ne.s32.totalorder %s135, %s136
      %p150 = scmp.eq.s32.totalorder %s22, 1
      %p151 = por %p149, %p150
      %p153 = scmp.ne.s32.totalorder %s136, %s152
      %p154 = scmp.eq.s32.totalorder %s22, 0
      %p155 = por %p153, %p154
      %s156 = ssub.s32 %s24, %s31
      %p157 = scmp.eq.s32.totalorder %s156, 0
      %s159 = sadd.s32 %s158, 1
      %s160 = scalar_select %p157, %s158, %s159
      %p163 = pneg %p157
      %p164 = scmp.eq.s32.totalorder %s16, 1
      %p165 = por %p163, %p164
      %p166 = scmp.ne.s32.totalorder %s158, %s161
      %p167 = scmp.eq.s32.totalorder %s16, 0
      %p168 = por %p166, %p167
      %p169 = scmp.ne.s32.totalorder %s158, %s161
      %p170 = scmp.eq.s32.totalorder %s21, 1
      %p171 = por %p169, %p170
      %p172 = scmp.ne.s32.totalorder %s161, %s162
      %p173 = scmp.eq.s32.totalorder %s21, 0
      %p174 = por %p172, %p173
      %p175 = scmp.ne.s32.totalorder %s161, %s162
      %p176 = scmp.eq.s32.totalorder %s22, 1
      %p177 = por %p175, %p176
      %p179 = scmp.ne.s32.totalorder %s162, %s178
      %p180 = scmp.eq.s32.totalorder %s22, 0
      %p181 = por %p179, %p180
      %s183 = sadd.s32 %s182, 1
      %p186 = scmp.eq.s32.totalorder %s16, 1
      %p187 = scmp.ne.s32.totalorder %s182, %s184
      %p188 = scmp.eq.s32.totalorder %s16, 0
      %p189 = por %p187, %p188
      %p190 = scmp.ne.s32.totalorder %s182, %s184
      %p191 = scmp.eq.s32.totalorder %s21, 1
      %p192 = por %p190, %p191
      %p193 = scmp.ne.s32.totalorder %s184, %s185
      %p194 = scmp.eq.s32.totalorder %s21, 0
      %p195 = por %p193, %p194
      %p196 = scmp.ne.s32.totalorder %s184, %s185
      %p197 = scmp.eq.s32.totalorder %s22, 1
      %p198 = por %p196, %p197
      %p200 = scmp.ne.s32.totalorder %s185, %s199
      %p201 = scmp.eq.s32.totalorder %s22, 0
      %p202 = por %p200, %p201
      %s203 = ssub.s32 %s23, %s35
      %p204 = scmp.eq.s32.totalorder %s203, 0
      %s206 = sadd.s32 %s205, 1
      %s207 = scalar_select %p204, %s205, %s206
      %p210 = pneg %p204
      %p211 = scmp.eq.s32.totalorder %s16, 1
      %p212 = por %p210, %p211
      %p213 = scmp.ne.s32.totalorder %s205, %s208
      %p214 = scmp.eq.s32.totalorder %s16, 0
      %p215 = por %p213, %p214
      %p216 = scmp.ne.s32.totalorder %s205, %s208
      %p217 = scmp.eq.s32.totalorder %s21, 1
      %p218 = por %p216, %p217
      %p219 = scmp.ne.s32.totalorder %s208, %s209
      %p220 = scmp.eq.s32.totalorder %s21, 0
      %p221 = por %p219, %p220
      %p222 = scmp.ne.s32.totalorder %s208, %s209
      %p223 = scmp.eq.s32.totalorder %s22, 1
      %p224 = por %p222, %p223
      %p226 = scmp.ne.s32.totalorder %s209, %s225
      %p227 = scmp.eq.s32.totalorder %s22, 0
      %p228 = por %p226, %p227
      %p229 = scmp.le.s32.totalorder 1, %s16
      %p230 = scmp.lt.s32.totalorder %s16, 3
      %p231 = pnand %p229, %p230
      %p232 = pneg %p231
      // Predicated region
      $region9: #{_normalized_ffn_impl.1} parent=5 // pred_check
        _
      $region10: #{_normalized_ffn_impl.1} parent=5 // pred_check_branch
        %234 = sbr.rel (%p231) target = $region12
      $region11: #{_normalized_ffn_impl.1} parent=5 // pred_region
        %s235 = ssub.s32 %s16, 1
        // Predicated region
        $region13: #{_normalized_ffn_impl.1} parent=11 // pred_check
          %p236 = pneg %p75
        $region14: #{_normalized_ffn_impl.1} parent=11 // pred_check_branch
          %238 = sbr.rel (%p236) target = $region16
        $region15: #{_normalized_ffn_impl.1} parent=11 // pred_region
          _
        $region16: #{_normalized_ffn_impl.1} parent=11 // pred_fallthru
          _
        // Predicated region
        $region17: #{_normalized_ffn_impl.1} parent=11 // pred_check
          %p239 = pneg %p96
        $region18: #{_normalized_ffn_impl.1} parent=11 // pred_check_branch
          %241 = sbr.rel (%p239) target = $region20
        $region19: #{_normalized_ffn_impl.1} parent=11 // pred_region
          _
        $region20: #{_normalized_ffn_impl.1} parent=11 // pred_fallthru
          _
        // Predicated region
        $region21: #{_normalized_ffn_impl.1} parent=11 // pred_check
          %p242 = pneg %p122
        $region22: #{_normalized_ffn_impl.1} parent=11 // pred_check_branch
          %244 = sbr.rel (%p242) target = $region24
        $region23: #{_normalized_ffn_impl.1} parent=11 // pred_region
          %p245 = scmp.lt.s32.totalorder %s26, 0
          %s246 = scalar_select %p245, %s26, 0
          %s247 = smul.addr %s246, 4
          %s248 = scalar_lea.vmem %s3, %s247
        $region24: #{_normalized_ffn_impl.1} parent=11 // pred_fallthru
          _
        // Predicated region
        $region25: #{_normalized_ffn_impl.1} parent=11 // pred_check
          %p249 = pneg %p148
        $region26: #{_normalized_ffn_impl.1} parent=11 // pred_check_branch
          %251 = sbr.rel (%p249) target = $region28
        $region27: #{_normalized_ffn_impl.1} parent=11 // pred_region
          %p252 = scmp.lt.s32.totalorder %s26, 0
          %s253 = scalar_select %p252, %s26, 0
          %s254 = scalar_lea.vmem %s4, %s253
        $region28: #{_normalized_ffn_impl.1} parent=11 // pred_fallthru
          _
        // Predicated region
        $region29: #{_normalized_ffn_impl.1} parent=11 // pred_check
          %p255 = pneg %p174
        $region30: #{_normalized_ffn_impl.1} parent=11 // pred_check_branch
          %257 = sbr.rel (%p255) target = $region32
        $region31: #{_normalized_ffn_impl.1} parent=11 // pred_region
          %s258 = smul.u32 16, %s26
          %p259 = scmp.lt.s32.totalorder %s258, 15
          %s260 = scalar_select %p259, %s258, 15
          %s261 = smul.addr %s260, 4
          %s262 = scalar_lea.vmem %s5, %s261
          %s263 = smul.u32 16, %s26
        $region32: #{_normalized_ffn_impl.1} parent=11 // pred_fallthru
          _
        // Predicated region
        $region33: #{_normalized_ffn_impl.1} parent=11 // pred_check
          %p264 = pneg %p195
        $region34: #{_normalized_ffn_impl.1} parent=11 // pred_check_branch
          %266 = sbr.rel (%p264) target = $region36
        $region35: #{_normalized_ffn_impl.1} parent=11 // pred_region
          _
        $region36: #{_normalized_ffn_impl.1} parent=11 // pred_fallthru
          _
      $region12: #{_normalized_ffn_impl.1} parent=5 // pred_fallthru
        _
      %p267 = scmp.lt.s32.totalorder %s16, 2
      // Predicated region
      $region37: #{_normalized_ffn_impl.1} parent=5 // pred_check
        %p268 = pneg %p267
      $region38: #{_normalized_ffn_impl.1} parent=5 // pred_check_branch
        %270 = sbr.rel (%p268) target = $region40
      $region39: #{_normalized_ffn_impl.1} parent=5 // pred_region
        // Predicated region
        $region41: #{_normalized_ffn_impl.1} parent=39 // pred_check
          %p271 = pneg %p48
        $region42: #{_normalized_ffn_impl.1} parent=39 // pred_check_branch
          %273 = sbr.rel (%p271) target = $region44
        $region43: #{_normalized_ffn_impl.1} parent=39 // pred_region
          %s274 = smul.u32 2, %s23
          %p275 = scmp.lt.s32.totalorder %s274, 3
          %s276 = scalar_select %p275, %s274, 3
          %s277 = smul.addr %s276, 8
          %s278 = scalar_lea.vmem %s0, %s277
          %s279 = smul.u32 2, %s23
        $region44: #{_normalized_ffn_impl.1} parent=39 // pred_fallthru
          _
      $region40: #{_normalized_ffn_impl.1} parent=5 // pred_fallthru
        _
      %p280 = scmp.le.s32.totalorder 1, %s16
      %p281 = scmp.lt.s32.totalorder %s16, 3
      %p282 = pnand %p280, %p281
      %p283 = pneg %p282
      // Predicated region
      $region45: #{_normalized_ffn_impl.1} parent=5 // pred_check
        _
      $region46: #{_normalized_ffn_impl.1} parent=5 // pred_check_branch
        %285 = sbr.rel (%p282) target = $region48
      $region47: #{_normalized_ffn_impl.1} parent=5 // pred_region
        %s286 = ssub.s32 %s16, 1
        %s287 = smul.u32 2, %s25
        %p288 = scmp.lt.s32.totalorder %s287, 3
        %s289 = scalar_select %p288, %s287, 3
        %s290 = smul.addr %s289, 8
        %s291 = scalar_lea.vmem %s0, %s290
        %p292 = pneg %p54
        %p293 = pneg %p51
        %p294 = pneg %p75
        %p295 = pneg %p72
        %p296 = pneg %p96
        %p297 = pneg %p93
        %p298 = scmp.lt.s32.totalorder %s26, 0
        %s299 = scalar_select %p298, %s26, 0
        %s300 = smul.addr %s299, 4
        %s301 = scalar_lea.vmem %s3, %s300
        %p302 = pneg %p122
        %p303 = pneg %p119
        %p304 = scmp.lt.s32.totalorder %s26, 0
        %s305 = scalar_select %p304, %s26, 0
        %s306 = scalar_lea.vmem %s4, %s305
        %p307 = pneg %p148
        %p308 = pneg %p145
        %s309 = smul.u32 16, %s26
        %p310 = scmp.lt.s32.totalorder %s309, 15
        %s311 = scalar_select %p310, %s309, 15
        %s312 = smul.addr %s311, 4
        %s313 = scalar_lea.vmem %s5, %s312
        %p314 = pneg %p174
        %p315 = pneg %p171
        %p316 = pneg %p195
        %p317 = pneg %p192
        %p318 = pneg %p221
        %p319 = pneg %p218
        %s320 = sand.u32 %s208, 1
        %s321 = scalar_lea.sflag [#allocation5], %s320
        %s322 = sand.u32 %s208, 1
        %s323 = smul.addr %s322, 16
        %s324 = scalar_lea.vmem [#allocation4], %s323
        %s325 = smul.u32 2, %s25
        %p326 = scmp.lt.s32.totalorder %s325, 3
        %s327 = scalar_select %p326, %s325, 3
        %s328 = smul.addr %s327, 8
        %s329 = scalar_lea.vmem %s0, %s328
        %s330 = smul.u32 2, %s25
        %p331 = scmp.lt.s32.totalorder %s26, 0
        %s332 = scalar_select %p331, %s26, 0
        %s333 = smul.addr %s332, 4
        %s334 = scalar_lea.vmem %s3, %s333
        %p335 = scmp.lt.s32.totalorder %s26, 0
        %s336 = scalar_select %p335, %s26, 0
        %s337 = scalar_lea.vmem %s4, %s336
        %s338 = smul.u32 16, %s26
        %p339 = scmp.lt.s32.totalorder %s338, 15
        %s340 = scalar_select %p339, %s338, 15
        %s341 = smul.addr %s340, 4
        %s342 = scalar_lea.vmem %s5, %s341
        %s343 = smul.u32 16, %s26
        %s344 = smul.u32 2, %s25
        %p347 = scmp.eq.s32.totalorder %s26, 0
        // Predicated region
        $region49: #{_normalized_ffn_impl.1} parent=47 // pred_check
          %p348 = pneg %p347
        $region50: #{_normalized_ffn_impl.1} parent=47 // pred_check_branch
          %350 = sbr.rel (%p348) target = $region52
        $region51: #{_normalized_ffn_impl.1} parent=47 // pred_region
          %v351 = vld [vmem:[%s329] sm:$0xff]
          %v352 = vld [vmem:[%s329 + $0x8] sm:$0xff]
          %353 = vadd.xlane.f32.xlu0 %v351
          %v354 = vpop.xlane.xlu0 %353
          %355 = vadd.xlane.f32.xlu0 %v352
          %v356 = vpop.xlane.xlu0 %355
          %v357 = vmul.f32 %v354, 0.03125
          %v358 = vmul.f32 %v356, 0.03125
          %v359 = vsub.f32 %v351, %v357
          %v360 = vsub.f32 %v352, %v358
          %v361 = vmul.f32 %v359, %v359
          %v362 = vmul.f32 %v360, %v360
          %363 = vadd.xlane.f32.xlu0 %v361
          %v364 = vpop.xlane.xlu0 %363
          %365 = vadd.xlane.f32.xlu0 %v362
          %v366 = vpop.xlane.xlu0 %365
          %v367 = vmul.f32 %v357, %v357
          %v368 = vmul.f32 %v358, %v358
          %v369 = vmul.f32 %v367, 96.0
          %v370 = vmul.f32 %v368, 96.0
          %v371 = vsub.f32 %v364, %v369
          %v372 = vsub.f32 %v366, %v370
          %v373 = vmul.f32 %v371, 0.03125
          %v374 = vmul.f32 %v372, 0.03125
          %v375 = vadd.f32 %v373, 1e-05
          %v376 = vadd.f32 %v374, 1e-05
          %v377 = vrsqrt.pop %v375
          %v378 = vrsqrt.pop %v376
          %v379 = vmul.f32 %v359, %v377
          %v380 = vmul.f32 %v360, %v378
          %v381 = vld [vmem:[%s1] sm:$0x1]
          %v383 = vlaneseq
          %v384 = vshrl.u32 %v383, 7
          %v385 = vsub.s32 0, %v384
          %v386 = vrot.slane %v381, %v385
          %v388 = vmul.f32 %v379, %v386
          %v389 = vmul.f32 %v380, %v386
          %v390 = vld [vmem:[%s2] sm:$0x1]
          %v392 = vlaneseq
          %v393 = vshrl.u32 %v392, 7
          %v394 = vsub.s32 0, %v393
          %v395 = vrot.slane %v390, %v394
          %v397 = vadd.f32 %v388, %v395
          %v398 = vadd.f32 %v389, %v395
          %v399 = vpack.c.bf16 %v398, %v397
          %v401 = vunpack.c.l.b16 %v399
          %v402 = vunpack.c.h.b16 %v399
          %v403 = vpack.c.b16 %v401, %v401
          %v404 = vpack.c.b16 %v402, %v402
          %407 = vst [vmem:[#allocation3] sm:$0xf] %v403
          %408 = vst [vmem:[#allocation3 + $0x4] sm:$0xf] %v404
          %409 = vst [vmem:[#allocation2] sm:$0xff] 0.0
          %410 = vst [vmem:[#allocation2 + $0x8] sm:$0xff] 0.0
        $region52: #{_normalized_ffn_impl.1} parent=47 // pred_fallthru
          _
        %v411 = vld [vmem:[#allocation3] sm:$0xf]
        %v412 = vld [vmem:[#allocation3 + $0x4] sm:$0xf]
        %v413 = vld [vmem:[%s334] sm:$0xf]
        %v414 = vld [vmem:[%s334 + $0x4] sm:$0xf]
        %v415 = vld [vmem:[%s334 + $0x8] sm:$0xf]
        %v416 = vld [vmem:[%s334 + $0xc] sm:$0xf]
        %v417 = vld [vmem:[%s334 + $0x10] sm:$0xf]
        %v418 = vld [vmem:[%s334 + $0x14] sm:$0xf]
        %v419 = vld [vmem:[%s334 + $0x18] sm:$0xf]
        %v420 = vld [vmem:[%s334 + $0x1c] sm:$0xf]
        %v421 = vld [vmem:[%s334 + $0x20] sm:$0xf]
        %v422 = vld [vmem:[%s334 + $0x24] sm:$0xf]
        %v423 = vld [vmem:[%s334 + $0x28] sm:$0xf]
        %v424 = vld [vmem:[%s334 + $0x2c] sm:$0xf]
        %v425 = vld [vmem:[%s334 + $0x30] sm:$0xf]
        %v426 = vld [vmem:[%s334 + $0x34] sm:$0xf]
        %v427 = vld [vmem:[%s334 + $0x38] sm:$0xf]
        %v428 = vld [vmem:[%s334 + $0x3c] sm:$0xf]
        %v429 = vld [vmem:[%s337] sm:$0x1]
        %v431 = vlaneseq
        %v432 = vshrl.u32 %v431, 7
        %v433 = vsub.s32 0, %v432
        %v434 = vrot.slane %v429, %v433
        %v438 = vunpack.c.l.b16 %v411
        %v439 = vunpack.c.l.b16 %v412
        %v440 = vpack.c.b16 %v439, %v438
        %v458 = vunpack.c.l.b16 %v413
        %v459 = vunpack.c.l.b16 %v414
        %v460 = vunpack.c.l.b16 %v415
        %v461 = vunpack.c.l.b16 %v416
        %v462 = vunpack.c.l.b16 %v417
        %v463 = vunpack.c.l.b16 %v418
        %v464 = vunpack.c.l.b16 %v419
        %v465 = vunpack.c.l.b16 %v420
        %v466 = vunpack.c.l.b16 %v421
        %v467 = vunpack.c.l.b16 %v422
        %v468 = vunpack.c.l.b16 %v423
        %v469 = vunpack.c.l.b16 %v424
        %v470 = vunpack.c.l.b16 %v425
        %v471 = vunpack.c.l.b16 %v426
        %v472 = vunpack.c.l.b16 %v427
        %v473 = vunpack.c.l.b16 %v428
        %v474 = vpack.c.b16 %v459, %v458
        %v475 = vpack.c.b16 %v461, %v460
        %v476 = vpack.c.b16 %v463, %v462
        %v477 = vpack.c.b16 %v465, %v464
        %v478 = vpack.c.b16 %v467, %v466
        %v479 = vpack.c.b16 %v469, %v468
        %v480 = vpack.c.b16 %v471, %v470
        %v481 = vpack.c.b16 %v473, %v472
        %490 = vmatprep.subr.bf16.mxu0 0
        %491 = vmatpush1.bf16.msra.mxu0 %v481
        %492 = vmatprep.subr.bf16.mxu0 0
        %493 = vmatpush1.bf16.msra.mxu0 %v480
        %494 = vmatprep.subr.bf16.mxu0 0
        %495 = vmatpush1.bf16.msra.mxu0 %v479
        %496 = vmatprep.subr.bf16.mxu0 0
        %497 = vmatpush1.bf16.msra.mxu0 %v478
        %498 = vmatprep.subr.bf16.mxu0 0
        %499 = vmatpush1.bf16.msra.mxu0 %v477
        %500 = vmatprep.subr.bf16.mxu0 0
        %501 = vmatpush1.bf16.msra.mxu0 %v476
        %502 = vmatprep.subr.bf16.mxu0 0
        %503 = vmatpush1.bf16.msra.mxu0 %v475
        %504 = vmatprep.subr.bf16.mxu0 0
        %505 = vmatpush1.bf16.msra.mxu0 %v474
        %506 = vmatprep.subr.bf16.mxu0 0
        %507 = vmatpush2.bf16.msra.mxu0 0
        %508 = vmatprep.subr.bf16.mxu0 0
        %509 = vmatpush2.bf16.msra.mxu0 0
        %510 = vmatprep.subr.bf16.mxu0 0
        %511 = vmatpush2.bf16.msra.mxu0 0
        %512 = vmatprep.subr.bf16.mxu0 0
        %513 = vmatpush2.bf16.msra.mxu0 0
        %514 = vmatprep.subr.bf16.mxu0 0
        %515 = vmatpush2.bf16.msra.mxu0 0
        %516 = vmatprep.subr.bf16.mxu0 0
        %517 = vmatpush2.bf16.msra.mxu0 0
        %518 = vmatprep.subr.bf16.mxu0 0
        %519 = vmatpush2.bf16.msra.mxu0 0
        %520 = vmatprep.subr.bf16.mxu0 0
        %521 = vmatpush2.bf16.msra.mxu0 0
        %522 = vmatprep.mubr.bf16.mxu0 0
        %523 = vmatmul.mubr.bf16.gmra.mxu0 %v440
        %v524 = vpop.f32.mrf.mxu0
        %v525 = vadd.f32 %v434, %v524
        %v526 = vpop.f32.mrf.mxu0
        %v527 = vpop.f32.mrf.mxu0
        %v528 = vadd.f32 %v434, %v527
        %v529 = vpop.f32.mrf.mxu0
        %530 = vdwg.mxu0
        %v531 = vpack.c.bf16 %v528, %v525
        %v532 = vxor.u32 %v531, 2147516416
        %v534 = vmul.bf16 %v532, 1069105081
        %v535 = vpow.bf16.pop %v534
        %v536 = vadd.bf16 %v535, 1065369472
        %v537 = vrcp.bf16.pop %v536
        %v538 = vmul.bf16 1065369472, %v537
        %v539 = vmul.bf16 %v531, %v538
        %v540 = vld [vmem:[#allocation2] sm:$0xff]
        %v541 = vld [vmem:[#allocation2 + $0x8] sm:$0xff]
        %v542 = vld [vmem:[%s342] sm:$0xf]
        %v543 = vld [vmem:[%s342 + $0x4] sm:$0xf]
        %v544 = vld [vmem:[%s342 + $0x8] sm:$0xf]
        %v545 = vld [vmem:[%s342 + $0xc] sm:$0xf]
        %v546 = vld [vmem:[%s342 + $0x10] sm:$0xf]
        %v547 = vld [vmem:[%s342 + $0x14] sm:$0xf]
        %v548 = vld [vmem:[%s342 + $0x18] sm:$0xf]
        %v549 = vld [vmem:[%s342 + $0x1c] sm:$0xf]
        %v550 = vld [vmem:[%s342 + $0x20] sm:$0xf]
        %v551 = vld [vmem:[%s342 + $0x24] sm:$0xf]
        %v552 = vld [vmem:[%s342 + $0x28] sm:$0xf]
        %v553 = vld [vmem:[%s342 + $0x2c] sm:$0xf]
        %v554 = vld [vmem:[%s342 + $0x30] sm:$0xf]
        %v555 = vld [vmem:[%s342 + $0x34] sm:$0xf]
        %v556 = vld [vmem:[%s342 + $0x38] sm:$0xf]
        %v557 = vld [vmem:[%s342 + $0x3c] sm:$0xf]
        %v574 = vunpack.c.l.b16 %v542
        %v575 = vunpack.c.l.b16 %v543
        %v576 = vunpack.c.l.b16 %v544
        %v577 = vunpack.c.l.b16 %v545
        %v578 = vunpack.c.l.b16 %v546
        %v579 = vunpack.c.l.b16 %v547
        %v580 = vunpack.c.l.b16 %v548
        %v581 = vunpack.c.l.b16 %v549
        %v582 = vunpack.c.l.b16 %v550
        %v583 = vunpack.c.l.b16 %v551
        %v584 = vunpack.c.l.b16 %v552
        %v585 = vunpack.c.l.b16 %v553
        %v586 = vunpack.c.l.b16 %v554
        %v587 = vunpack.c.l.b16 %v555
        %v588 = vunpack.c.l.b16 %v556
        %v589 = vunpack.c.l.b16 %v557
        %v590 = vpack.c.b16 %v575, %v574
        %v591 = vpack.c.b16 %v577, %v576
        %v592 = vpack.c.b16 %v579, %v578
        %v593 = vpack.c.b16 %v581, %v580
        %v594 = vpack.c.b16 %v583, %v582
        %v595 = vpack.c.b16 %v585, %v584
        %v596 = vpack.c.b16 %v587, %v586
        %v597 = vpack.c.b16 %v589, %v588
        %606 = vmatprep.subr.bf16.mxu0 0
        %607 = vmatpush1.bf16.msra.mxu0 %v597
        %608 = vmatprep.subr.bf16.mxu0 0
        %609 = vmatpush1.bf16.msra.mxu0 %v596
        %610 = vmatprep.subr.bf16.mxu0 0
        %611 = vmatpush1.bf16.msra.mxu0 %v595
        %612 = vmatprep.subr.bf16.mxu0 0
        %613 = vmatpush1.bf16.msra.mxu0 %v594
        %614 = vmatprep.subr.bf16.mxu0 0
        %615 = vmatpush1.bf16.msra.mxu0 %v593
        %616 = vmatprep.subr.bf16.mxu0 0
        %617 = vmatpush1.bf16.msra.mxu0 %v592
        %618 = vmatprep.subr.bf16.mxu0 0
        %619 = vmatpush1.bf16.msra.mxu0 %v591
        %620 = vmatprep.subr.bf16.mxu0 0
        %621 = vmatpush1.bf16.msra.mxu0 %v590
        %622 = vmatprep.subr.bf16.mxu0 0
        %623 = vmatpush2.bf16.msra.mxu0 0
        %624 = vmatprep.subr.bf16.mxu0 0
        %625 = vmatpush2.bf16.msra.mxu0 0
        %626 = vmatprep.subr.bf16.mxu0 0
        %627 = vmatpush2.bf16.msra.mxu0 0
        %628 = vmatprep.subr.bf16.mxu0 0
        %629 = vmatpush2.bf16.msra.mxu0 0
        %630 = vmatprep.subr.bf16.mxu0 0
        %631 = vmatpush2.bf16.msra.mxu0 0
        %632 = vmatprep.subr.bf16.mxu0 0
        %633 = vmatpush2.bf16.msra.mxu0 0
        %634 = vmatprep.subr.bf16.mxu0 0
        %635 = vmatpush2.bf16.msra.mxu0 0
        %636 = vmatprep.subr.bf16.mxu0 0
        %637 = vmatpush2.bf16.msra.mxu0 0
        %638 = vmatprep.mubr.bf16.mxu0 0
        %639 = vmatmul.mubr.bf16.gmra.mxu0 %v539
        %v640 = vpop.f32.mrf.mxu0
        %v641 = vadd.f32 0.0, %v640
        %v642 = vpop.f32.mrf.mxu0
        %v643 = vpop.f32.mrf.mxu0
        %v644 = vadd.f32 0.0, %v643
        %v645 = vpop.f32.mrf.mxu0
        %646 = vdwg.mxu0
        %v647 = vadd.f32 %v540, %v641
        %v648 = vadd.f32 %v541, %v644
        %649 = vst [vmem:[#allocation2] sm:$0xff] %v647
        %650 = vst [vmem:[#allocation2 + $0x8] sm:$0xff] %v648
        // Predicated region
        $region53: #{_normalized_ffn_impl.1} parent=47 // pred_check
          %p651 = pneg %p347
        $region54: #{_normalized_ffn_impl.1} parent=47 // pred_check_branch
          %653 = sbr.rel (%p651) target = $region56
        $region55: #{_normalized_ffn_impl.1} parent=47 // pred_region
          %v654 = vld [vmem:[#allocation2] sm:$0xff]
          %v655 = vld [vmem:[#allocation2 + $0x8] sm:$0xff]
          %v656 = vld [vmem:[%s6] sm:$0x1]
          %v658 = vlaneseq
          %v659 = vshrl.u32 %v658, 7
          %v660 = vsub.s32 0, %v659
          %v661 = vrot.slane %v656, %v660
          %v663 = vadd.f32 %v654, %v661
          %v664 = vadd.f32 %v655, %v661
          %v665 = vld [vmem:[%s329] sm:$0xff]
          %v666 = vld [vmem:[%s329 + $0x8] sm:$0xff]
          %v667 = vadd.f32 %v663, %v665
          %v668 = vadd.f32 %v664, %v666
          %669 = vst [vmem:[%s324] sm:$0xff] %v667
          %670 = vst [vmem:[%s324 + $0x8] sm:$0xff] %v668
        $region56: #{_normalized_ffn_impl.1} parent=47 // pred_fallthru
          _
        %s671 = sand.u32 %s208, 1
        %s672 = scalar_lea.sflag [#allocation5], %s671
        %s673 = sand.u32 %s208, 1
        %s674 = smul.addr %s673, 16
        %s675 = scalar_lea.vmem [#allocation4], %s674
        // Predicated region
        $region57: #{_normalized_ffn_impl.1} parent=47 // pred_check
          %p676 = pneg %p218
        $region58: #{_normalized_ffn_impl.1} parent=47 // pred_check_branch
          %678 = sbr.rel (%p676) target = $region60
        $region59: #{_normalized_ffn_impl.1} parent=47 // pred_region
          %s679 = smul.u32 2, %s25
          %s681 = ssub.s32 256, 256
          %682 = vsyncadd %s672, %s681
          %s683 = smul.addr %s679, 128
          %s684 = scalar_lea.hbm %s7, %s683
          %s685 = sshll.u32 %s675, 4
          %s686 = int_to_ptr.vmem [resolvable:$true] %s685
          %691 = dma.vmem_to_hbm [thread:$0]  %s686, 256, %s684, %s672, 128, 128, 8
        $region60: #{_normalized_ffn_impl.1} parent=47 // pred_fallthru
          _
      $region48: #{_normalized_ffn_impl.1} parent=5 // pred_fallthru
        _
      %p692 = scmp.le.s32.totalorder 2, %s16
      // Predicated region
      $region61: #{_normalized_ffn_impl.1} parent=5 // pred_check
        %p693 = pneg %p692
      $region62: #{_normalized_ffn_impl.1} parent=5 // pred_check_branch
        %695 = sbr.rel (%p693) target = $region64
      $region63: #{_normalized_ffn_impl.1} parent=5 // pred_region
        %s696 = ssub.s32 %s16, 2
        // Predicated region
        $region65: #{_normalized_ffn_impl.1} parent=63 // pred_check
          %p697 = pneg %p224
        $region66: #{_normalized_ffn_impl.1} parent=63 // pred_check_branch
          %699 = sbr.rel (%p697) target = $region68
        $region67: #{_normalized_ffn_impl.1} parent=63 // pred_region
          %s700 = sand.u32 %s209, 1
          %s701 = scalar_lea.sflag [#allocation5], %s700
          %s702 = sand.u32 %s209, 1
          %s703 = smul.addr %s702, 16
          %s704 = scalar_lea.vmem [#allocation4], %s703
          %705 = dma.done %s701, 256
        $region68: #{_normalized_ffn_impl.1} parent=63 // pred_fallthru
          _
      $region64: #{_normalized_ffn_impl.1} parent=5 // pred_fallthru
        _
    $region6: #{_normalized_ffn_impl.1} parent=1 // loop_footer
      %s20 = sadd.s32 1, %s16
    $region7: #{_normalized_ffn_impl.1} parent=1 // loop_footer_branch
      %15 = sbr.rel target = $region3
    $region8: #{_normalized_ffn_impl.1} parent=1 // loop_exit
      _
    %706 = vsyncpa [#allocation5], 1
    %s707 = scalar_lea.sflag [#allocation5], 1
    %708 = vsyncpa %s707, 1

// kernel: _normalized_ffn_impl.1
$region0: #{_normalized_ffn_impl.1}
  #allocation0 [shape = 'u32[]', space=smem, size = 0x4, offset = 0x4, fixed_abs, tag = 'smem constant byte address 0x4 - core index']
  #allocation1 [shape = 'u32[144,128]{1,0:T(1,128)}', space=vmem, size = 0x12000, scoped, tag = 'internal scratch']
  #allocation2 [shape = 'f32[16,128]{1,0:T(8,128)}', space=vmem, size = 0x2000, scoped, tag = 'scratch operand']
  #allocation3 [shape = 'bf16[16,128]{1,0:T(8,128)(2,1)}', space=vmem, size = 0x1000, scoped, tag = 'scratch operand']
  %s0 = inlined_call_operand.vmem [shape: f32[32,128], index: 0, kind: input, shape index: {}]
  %s1 = inlined_call_operand.vmem [shape: f32[1,128], index: 1, kind: input, shape index: {}]
  %s2 = inlined_call_operand.vmem [shape: f32[1,128], index: 2, kind: input, shape index: {}]
  %s3 = inlined_call_operand.vmem [shape: bf16[128,128], index: 3, kind: input, shape index: {}]
  %s4 = inlined_call_operand.vmem [shape: f32[1,128], index: 4, kind: input, shape index: {}]
  %s5 = inlined_call_operand.vmem [shape: bf16[128,128], index: 5, kind: input, shape index: {}]
  %s6 = inlined_call_operand.vmem [shape: f32[1,128], index: 6, kind: input, shape index: {}]
  %s7 = inlined_call_operand.hbm [shape: f32[32,128], index: 7, kind: output, shape index: {}]
  %s8 = sld [smem:[#allocation0]]
  $region69: #{_normalized_ffn_impl.1} parent=0
    _
  %s10 = ssub.s32 1, %s8
  %s11 = scalar_select 0, %s10, %s8
  $region1: #{_normalized_ffn_impl.1} parent=0
    #allocation4 [shape = 'u8[16384]{0}', space=vmem, size = 0x4000, scoped, tag = 'output window, operand 0']
    #allocation5 [shape = 's32[2]{0}', space=sflag, size = 0x8, scoped, tag = 'scoped memory for _normalized_ffn_impl.1']
    %12 = vsyncpa [#allocation5], 0
    %s13 = scalar_lea.sflag [#allocation5], 1
    %14 = vsyncpa %s13, 0
    loop: start=0, step=1, limit=4
    $region2: #{_normalized_ffn_impl.1} parent=1 // loop_pre_header
      _
    $region3: #{_normalized_ffn_impl.1} parent=1 // loop_header
      %s16 = sphi 0, %s20
      %p17 = scmp.ge.s32.totalorder %s16, 4
      %s23 = sphi 0, %s35
      %s24 = sphi 0, %s31
      %s25 = sphi 0, %s23
      %s26 = sphi 0, %s24
      %s27 = sphi 0, %s25
      %s28 = sphi 0, %s26
      %s38 = sphi 0, %s40
      %s41 = sphi 0, %s38
      %s42 = sphi 0, %s41
      %s58 = sphi 0, %s42
      %s62 = sphi 0, %s62
      %s64 = sphi 0, %s62
      %s65 = sphi 0, %s64
      %s79 = sphi 0, %s65
      %s83 = sphi 0, %s83
      %s85 = sphi 0, %s83
      %s86 = sphi 0, %s85
      %s100 = sphi 0, %s86
      %s106 = sphi 0, %s108
      %s109 = sphi 0, %s106
      %s110 = sphi 0, %s109
      %s126 = sphi 0, %s110
      %s132 = sphi 0, %s134
      %s135 = sphi 0, %s132
      %s136 = sphi 0, %s135
      %s152 = sphi 0, %s136
      %s158 = sphi 0, %s160
      %s161 = sphi 0, %s158
      %s162 = sphi 0, %s161
      %s178 = sphi 0, %s162
      %s182 = sphi 0, %s182
      %s184 = sphi 0, %s182
      %s185 = sphi 0, %s184
      %s199 = sphi 0, %s185
      %s205 = sphi 0, %s207
      %s208 = sphi 0, %s205
      %s209 = sphi 0, %s208
      %s225 = sphi 0, %s209
    $region4: #{_normalized_ffn_impl.1} parent=1 // loop_header_branch
      %19 = sbr.rel (%p17) target = $region8
    $region5: #{_normalized_ffn_impl.1} parent=1 // loop_body
      %s21 = ssub.s32 %s16, 1
      %s22 = ssub.s32 %s16, 2
      %s29 = sadd.s32 1, %s24
      %p30 = scmp.ge.s32.totalorder %s29, 1
      %s31 = scalar_select %p30, 0, %s29
      %s32 = sadd.s32 1, %s23
      %s33 = scalar_select %p30, %s32, %s23
      %p34 = scmp.ge.s32.totalorder %s33, 2
      %s35 = scalar_select %p34, 0, %s33
      %s36 = ssub.s32 %s23, %s35
      %p37 = scmp.eq.s32.totalorder %s36, 0
      %s39 = sadd.s32 %s38, 1
      %s40 = scalar_select %p37, %s38, %s39
      %p43 = pneg %p37
      %p44 = scmp.eq.s32.totalorder %s16, 1
      %p45 = por %p43, %p44
      %p46 = scmp.ne.s32.totalorder %s38, %s41
      %p47 = scmp.eq.s32.totalorder %s16, 0
      %p48 = por %p46, %p47
      %p49 = scmp.ne.s32.totalorder %s38, %s41
      %p50 = scmp.eq.s32.totalorder %s21, 1
      %p51 = por %p49, %p50
      %p52 = scmp.ne.s32.totalorder %s41, %s42
      %p53 = scmp.eq.s32.totalorder %s21, 0
      %p54 = por %p52, %p53
      %p55 = scmp.ne.s32.totalorder %s41, %s42
      %p56 = scmp.eq.s32.totalorder %s22, 1
      %p57 = por %p55, %p56
      %p59 = scmp.ne.s32.totalorder %s42, %s58
      %p60 = scmp.eq.s32.totalorder %s22, 0
      %p61 = por %p59, %p60
      %s63 = sadd.s32 %s62, 1
      %p66 = scmp.eq.s32.totalorder %s16, 1
      %p67 = scmp.ne.s32.totalorder %s62, %s64
      %p68 = scmp.eq.s32.totalorder %s16, 0
      %p69 = por %p67, %p68
      %p70 = scmp.ne.s32.totalorder %s62, %s64
      %p71 = scmp.eq.s32.totalorder %s21, 1
      %p72 = por %p70, %p71
      %p73 = scmp.ne.s32.totalorder %s64, %s65
      %p74 = scmp.eq.s32.totalorder %s21, 0
      %p75 = por %p73, %p74
      %p76 = scmp.ne.s32.totalorder %s64, %s65
      %p77 = scmp.eq.s32.totalorder %s22, 1
      %p78 = por %p76, %p77
      %p80 = scmp.ne.s32.totalorder %s65, %s79
      %p81 = scmp.eq.s32.totalorder %s22, 0
      %p82 = por %p80, %p81
      %s84 = sadd.s32 %s83, 1
      %p87 = scmp.eq.s32.totalorder %s16, 1
      %p88 = scmp.ne.s32.totalorder %s83, %s85
      %p89 = scmp.eq.s32.totalorder %s16, 0
      %p90 = por %p88, %p89
      %p91 = scmp.ne.s32.totalorder %s83, %s85
      %p92 = scmp.eq.s32.totalorder %s21, 1
      %p93 = por %p91, %p92
      %p94 = scmp.ne.s32.totalorder %s85, %s86
      %p95 = scmp.eq.s32.totalorder %s21, 0
      %p96 = por %p94, %p95
      %p97 = scmp.ne.s32.totalorder %s85, %s86
      %p98 = scmp.eq.s32.totalorder %s22, 1
      %p99 = por %p97, %p98
      %p101 = scmp.ne.s32.totalorder %s86, %s100
      %p102 = scmp.eq.s32.totalorder %s22, 0
      %p103 = por %p101, %p102
      %s104 = ssub.s32 %s24, %s31
      %p105 = scmp.eq.s32.totalorder %s104, 0
      %s107 = sadd.s32 %s106, 1
      %s108 = scalar_select %p105, %s106, %s107
      %p111 = pneg %p105
      %p112 = scmp.eq.s32.totalorder %s16, 1
      %p113 = por %p111, %p112
      %p114 = scmp.ne.s32.totalorder %s106, %s109
      %p115 = scmp.eq.s32.totalorder %s16, 0
      %p116 = por %p114, %p115
      %p117 = scmp.ne.s32.totalorder %s106, %s109
      %p118 = scmp.eq.s32.totalorder %s21, 1
      %p119 = por %p117, %p118
      %p120 = scmp.ne.s32.totalorder %s109, %s110
      %p121 = scmp.eq.s32.totalorder %s21, 0
      %p122 = por %p120, %p121
      %p123 = scmp.ne.s32.totalorder %s109, %s110
      %p124 = scmp.eq.s32.totalorder %s22, 1
      %p125 = por %p123, %p124
      %p127 = scmp.ne.s32.totalorder %s110, %s126
      %p128 = scmp.eq.s32.totalorder %s22, 0
      %p129 = por %p127, %p128
      %s130 = ssub.s32 %s24, %s31
      %p131 = scmp.eq.s32.totalorder %s130, 0
      %s133 = sadd.s32 %s132, 1
      %s134 = scalar_select %p131, %s132, %s133
      %p137 = pneg %p131
      %p138 = scmp.eq.s32.totalorder %s16, 1
      %p139 = por %p137, %p138
      %p140 = scmp.ne.s32.totalorder %s132, %s135
      %p141 = scmp.eq.s32.totalorder %s16, 0
      %p142 = por %p140, %p141
      %p143 = scmp.ne.s32.totalorder %s132, %s135
      %p144 = scmp.eq.s32.totalorder %s21, 1
      %p145 = por %p143, %p144
      %p146 = scmp.ne.s32.totalorder %s135, %s136
      %p147 = scmp.eq.s32.totalorder %s21, 0
      %p148 = por %p146, %p147
      %p149 = scmp.ne.s32.totalorder %s135, %s136
      %p150 = scmp.eq.s32.totalorder %s22, 1
      %p151 = por %p149, %p150
      %p153 = scmp.ne.s32.totalorder %s136, %s152
      %p154 = scmp.eq.s32.totalorder %s22, 0
      %p155 = por %p153, %p154
      %s156 = ssub.s32 %s24, %s31
      %p157 = scmp.eq.s32.totalorder %s156, 0
      %s159 = sadd.s32 %s158, 1
      %s160 = scalar_select %p157, %s158, %s159
      %p163 = pneg %p157
      %p164 = scmp.eq.s32.totalorder %s16, 1
      %p165 = por %p163, %p164
      %p166 = scmp.ne.s32.totalorder %s158, %s161
      %p167 = scmp.eq.s32.totalorder %s16, 0
      %p168 = por %p166, %p167
      %p169 = scmp.ne.s32.totalorder %s158, %s161
      %p170 = scmp.eq.s32.totalorder %s21, 1
      %p171 = por %p169, %p170
      %p172 = scmp.ne.s32.totalorder %s161, %s162
      %p173 = scmp.eq.s32.totalorder %s21, 0
      %p174 = por %p172, %p173
      %p175 = scmp.ne.s32.totalorder %s161, %s162
      %p176 = scmp.eq.s32.totalorder %s22, 1
      %p177 = por %p175, %p176
      %p179 = scmp.ne.s32.totalorder %s162, %s178
      %p180 = scmp.eq.s32.totalorder %s22, 0
      %p181 = por %p179, %p180
      %s183 = sadd.s32 %s182, 1
      %p186 = scmp.eq.s32.totalorder %s16, 1
      %p187 = scmp.ne.s32.totalorder %s182, %s184
      %p188 = scmp.eq.s32.totalorder %s16, 0
      %p189 = por %p187, %p188
      %p190 = scmp.ne.s32.totalorder %s182, %s184
      %p191 = scmp.eq.s32.totalorder %s21, 1
      %p192 = por %p190, %p191
      %p193 = scmp.ne.s32.totalorder %s184, %s185
      %p194 = scmp.eq.s32.totalorder %s21, 0
      %p195 = por %p193, %p194
      %p196 = scmp.ne.s32.totalorder %s184, %s185
      %p197 = scmp.eq.s32.totalorder %s22, 1
      %p198 = por %p196, %p197
      %p200 = scmp.ne.s32.totalorder %s185, %s199
      %p201 = scmp.eq.s32.totalorder %s22, 0
      %p202 = por %p200, %p201
      %s203 = ssub.s32 %s23, %s35
      %p204 = scmp.eq.s32.totalorder %s203, 0
      %s206 = sadd.s32 %s205, 1
      %s207 = scalar_select %p204, %s205, %s206
      %p210 = pneg %p204
      %p211 = scmp.eq.s32.totalorder %s16, 1
      %p212 = por %p210, %p211
      %p213 = scmp.ne.s32.totalorder %s205, %s208
      %p214 = scmp.eq.s32.totalorder %s16, 0
      %p215 = por %p213, %p214
      %p216 = scmp.ne.s32.totalorder %s205, %s208
      %p217 = scmp.eq.s32.totalorder %s21, 1
      %p218 = por %p216, %p217
      %p219 = scmp.ne.s32.totalorder %s208, %s209
      %p220 = scmp.eq.s32.totalorder %s21, 0
      %p221 = por %p219, %p220
      %p222 = scmp.ne.s32.totalorder %s208, %s209
      %p223 = scmp.eq.s32.totalorder %s22, 1
      %p224 = por %p222, %p223
      %p226 = scmp.ne.s32.totalorder %s209, %s225
      %p227 = scmp.eq.s32.totalorder %s22, 0
      %p228 = por %p226, %p227
      %p229 = scmp.le.s32.totalorder 1, %s16
      %p230 = scmp.lt.s32.totalorder %s16, 3
      %p231 = pnand %p229, %p230
      %p232 = pneg %p231
      // Predicated region
      $region9: #{_normalized_ffn_impl.1} parent=5 // pred_check
        _
      $region10: #{_normalized_ffn_impl.1} parent=5 // pred_check_branch
        %234 = sbr.rel (%p231) target = $region12
      $region11: #{_normalized_ffn_impl.1} parent=5 // pred_region
        %s235 = ssub.s32 %s16, 1
        // Predicated region
        $region13: #{_normalized_ffn_impl.1} parent=11 // pred_check
          %p236 = pneg %p75
        $region14: #{_normalized_ffn_impl.1} parent=11 // pred_check_branch
          %238 = sbr.rel (%p236) target = $region16
        $region15: #{_normalized_ffn_impl.1} parent=11 // pred_region
          _
        $region16: #{_normalized_ffn_impl.1} parent=11 // pred_fallthru
          _
        // Predicated region
        $region17: #{_normalized_ffn_impl.1} parent=11 // pred_check
          %p239 = pneg %p96
        $region18: #{_normalized_ffn_impl.1} parent=11 // pred_check_branch
          %241 = sbr.rel (%p239) target = $region20
        $region19: #{_normalized_ffn_impl.1} parent=11 // pred_region
          _
        $region20: #{_normalized_ffn_impl.1} parent=11 // pred_fallthru
          _
        // Predicated region
        $region21: #{_normalized_ffn_impl.1} parent=11 // pred_check
          %p242 = pneg %p122
        $region22: #{_normalized_ffn_impl.1} parent=11 // pred_check_branch
          %244 = sbr.rel (%p242) target = $region24
        $region23: #{_normalized_ffn_impl.1} parent=11 // pred_region
          %p245 = scmp.lt.s32.totalorder %s26, 0
          %s246 = scalar_select %p245, %s26, 0
          %s247 = smul.addr %s246, 4
          %s248 = scalar_lea.vmem %s3, %s247
        $region24: #{_normalized_ffn_impl.1} parent=11 // pred_fallthru
          _
        // Predicated region
        $region25: #{_normalized_ffn_impl.1} parent=11 // pred_check
          %p249 = pneg %p148
        $region26: #{_normalized_ffn_impl.1} parent=11 // pred_check_branch
          %251 = sbr.rel (%p249) target = $region28
        $region27: #{_normalized_ffn_impl.1} parent=11 // pred_region
          %p252 = scmp.lt.s32.totalorder %s26, 0
          %s253 = scalar_select %p252, %s26, 0
          %s254 = scalar_lea.vmem %s4, %s253
        $region28: #{_normalized_ffn_impl.1} parent=11 // pred_fallthru
          _
        // Predicated region
        $region29: #{_normalized_ffn_impl.1} parent=11 // pred_check
          %p255 = pneg %p174
        $region30: #{_normalized_ffn_impl.1} parent=11 // pred_check_branch
          %257 = sbr.rel (%p255) target = $region32
        $region31: #{_normalized_ffn_impl.1} parent=11 // pred_region
          %s258 = smul.u32 16, %s26
          %p259 = scmp.lt.s32.totalorder %s258, 15
          %s260 = scalar_select %p259, %s258, 15
          %s261 = smul.addr %s260, 4
          %s262 = scalar_lea.vmem %s5, %s261
          %s263 = smul.u32 16, %s26
        $region32: #{_normalized_ffn_impl.1} parent=11 // pred_fallthru
          _
        // Predicated region
        $region33: #{_normalized_ffn_impl.1} parent=11 // pred_check
          %p264 = pneg %p195
        $region34: #{_normalized_ffn_impl.1} parent=11 // pred_check_branch
          %266 = sbr.rel (%p264) target = $region36
        $region35: #{_normalized_ffn_impl.1} parent=11 // pred_region
          _
        $region36: #{_normalized_ffn_impl.1} parent=11 // pred_fallthru
          _
      $region12: #{_normalized_ffn_impl.1} parent=5 // pred_fallthru
        _
      %p267 = scmp.lt.s32.totalorder %s16, 2
      // Predicated region
      $region37: #{_normalized_ffn_impl.1} parent=5 // pred_check
        %p268 = pneg %p267
      $region38: #{_normalized_ffn_impl.1} parent=5 // pred_check_branch
        %270 = sbr.rel (%p268) target = $region40
      $region39: #{_normalized_ffn_impl.1} parent=5 // pred_region
        // Predicated region
        $region41: #{_normalized_ffn_impl.1} parent=39 // pred_check
          %p271 = pneg %p48
        $region42: #{_normalized_ffn_impl.1} parent=39 // pred_check_branch
          %273 = sbr.rel (%p271) target = $region44
        $region43: #{_normalized_ffn_impl.1} parent=39 // pred_region
          %s274 = smul.u32 2, %s23
          %p275 = scmp.lt.s32.totalorder %s274, 3
          %s276 = scalar_select %p275, %s274, 3
          %s277 = smul.addr %s276, 8
          %s278 = scalar_lea.vmem %s0, %s277
          %s279 = smul.u32 2, %s23
        $region44: #{_normalized_ffn_impl.1} parent=39 // pred_fallthru
          _
      $region40: #{_normalized_ffn_impl.1} parent=5 // pred_fallthru
        _
      %p280 = scmp.le.s32.totalorder 1, %s16
      %p281 = scmp.lt.s32.totalorder %s16, 3
      %p282 = pnand %p280, %p281
      %p283 = pneg %p282
      // Predicated region
      $region45: #{_normalized_ffn_impl.1} parent=5 // pred_check
        _
      $region46: #{_normalized_ffn_impl.1} parent=5 // pred_check_branch
        %285 = sbr.rel (%p282) target = $region48
      $region47: #{_normalized_ffn_impl.1} parent=5 // pred_region
        %s286 = ssub.s32 %s16, 1
        %s287 = smul.u32 2, %s25
        %p288 = scmp.lt.s32.totalorder %s287, 3
        %s289 = scalar_select %p288, %s287, 3
        %s290 = smul.addr %s289, 8
        %s291 = scalar_lea.vmem %s0, %s290
        %p292 = pneg %p54
        %p293 = pneg %p51
        %p294 = pneg %p75
        %p295 = pneg %p72
        %p296 = pneg %p96
        %p297 = pneg %p93
        %p298 = scmp.lt.s32.totalorder %s26, 0
        %s299 = scalar_select %p298, %s26, 0
        %s300 = smul.addr %s299, 4
        %s301 = scalar_lea.vmem %s3, %s300
        %p302 = pneg %p122
        %p303 = pneg %p119
        %p304 = scmp.lt.s32.totalorder %s26, 0
        %s305 = scalar_select %p304, %s26, 0
        %s306 = scalar_lea.vmem %s4, %s305
        %p307 = pneg %p148
        %p308 = pneg %p145
        %s309 = smul.u32 16, %s26
        %p310 = scmp.lt.s32.totalorder %s309, 15
        %s311 = scalar_select %p310, %s309, 15
        %s312 = smul.addr %s311, 4
        %s313 = scalar_lea.vmem %s5, %s312
        %p314 = pneg %p174
        %p315 = pneg %p171
        %p316 = pneg %p195
        %p317 = pneg %p192
        %p318 = pneg %p221
        %p319 = pneg %p218
        %s320 = sand.u32 %s208, 1
        %s321 = scalar_lea.sflag [#allocation5], %s320
        %s322 = sand.u32 %s208, 1
        %s323 = smul.addr %s322, 16
        %s324 = scalar_lea.vmem [#allocation4], %s323
        %s325 = smul.u32 2, %s25
        %p326 = scmp.lt.s32.totalorder %s325, 3
        %s327 = scalar_select %p326, %s325, 3
        %s328 = smul.addr %s327, 8
        %s329 = scalar_lea.vmem %s0, %s328
        %s330 = smul.u32 2, %s25
        %p331 = scmp.lt.s32.totalorder %s26, 0
        %s332 = scalar_select %p331, %s26, 0
        %s333 = smul.addr %s332, 4
        %s334 = scalar_lea.vmem %s3, %s333
        %p335 = scmp.lt.s32.totalorder %s26, 0
        %s336 = scalar_select %p335, %s26, 0
        %s337 = scalar_lea.vmem %s4, %s336
        %s338 = smul.u32 16, %s26
        %p339 = scmp.lt.s32.totalorder %s338, 15
        %s340 = scalar_select %p339, %s338, 15
        %s341 = smul.addr %s340, 4
        %s342 = scalar_lea.vmem %s5, %s341
        %s343 = smul.u32 16, %s26
        %s344 = smul.u32 2, %s25
        %p347 = scmp.eq.s32.totalorder %s26, 0
        // Predicated region
        $region49: #{_normalized_ffn_impl.1} parent=47 // pred_check
          %p348 = pneg %p347
        $region50: #{_normalized_ffn_impl.1} parent=47 // pred_check_branch
          %350 = sbr.rel (%p348) target = $region52
        $region51: #{_normalized_ffn_impl.1} parent=47 // pred_region
          %v351 = vld [vmem:[%s329] sm:$0xff]
          %v352 = vld [vmem:[%s329 + $0x8] sm:$0xff]
          %353 = vadd.xlane.f32.xlu0 %v351
          %v354 = vpop.xlane.xlu0 %353
          %355 = vadd.xlane.f32.xlu0 %v352
          %v356 = vpop.xlane.xlu0 %355
          %v357 = vmul.f32 %v354, 0.03125
          %v358 = vmul.f32 %v356, 0.03125
          %v359 = vsub.f32 %v351, %v357
          %v360 = vsub.f32 %v352, %v358
          %v361 = vmul.f32 %v359, %v359
          %v362 = vmul.f32 %v360, %v360
          %363 = vadd.xlane.f32.xlu0 %v361
          %v364 = vpop.xlane.xlu0 %363
          %365 = vadd.xlane.f32.xlu0 %v362
          %v366 = vpop.xlane.xlu0 %365
          %v367 = vmul.f32 %v357, %v357
          %v368 = vmul.f32 %v358, %v358
          %v369 = vmul.f32 %v367, 96.0
          %v370 = vmul.f32 %v368, 96.0
          %v371 = vsub.f32 %v364, %v369
          %v372 = vsub.f32 %v366, %v370
          %v373 = vmul.f32 %v371, 0.03125
          %v374 = vmul.f32 %v372, 0.03125
          %v375 = vadd.f32 %v373, 1e-05
          %v376 = vadd.f32 %v374, 1e-05
          %v377 = vrsqrt.pop %v375
          %v378 = vrsqrt.pop %v376
          %v379 = vmul.f32 %v359, %v377
          %v380 = vmul.f32 %v360, %v378
          %v381 = vld [vmem:[%s1] sm:$0x1]
          %v383 = vlaneseq
          %v384 = vshrl.u32 %v383, 7
          %v385 = vsub.s32 0, %v384
          %v386 = vrot.slane %v381, %v385
          %v388 = vmul.f32 %v379, %v386
          %v389 = vmul.f32 %v380, %v386
          %v390 = vld [vmem:[%s2] sm:$0x1]
          %v392 = vlaneseq
          %v393 = vshrl.u32 %v392, 7
          %v394 = vsub.s32 0, %v393
          %v395 = vrot.slane %v390, %v394
          %v397 = vadd.f32 %v388, %v395
          %v398 = vadd.f32 %v389, %v395
          %v399 = vpack.c.bf16 %v398, %v397
          %v401 = vunpack.c.l.b16 %v399
          %v402 = vunpack.c.h.b16 %v399
          %v403 = vpack.c.b16 %v401, %v401
          %v404 = vpack.c.b16 %v402, %v402
          %407 = vst [vmem:[#allocation3] sm:$0xf] %v403
          %408 = vst [vmem:[#allocation3 + $0x4] sm:$0xf] %v404
          %409 = vst [vmem:[#allocation2] sm:$0xff] 0.0
          %410 = vst [vmem:[#allocation2 + $0x8] sm:$0xff] 0.0
        $region52: #{_normalized_ffn_impl.1} parent=47 // pred_fallthru
          _
        %v411 = vld [vmem:[#allocation3] sm:$0xf]
        %v412 = vld [vmem:[#allocation3 + $0x4] sm:$0xf]
        %v413 = vld [vmem:[%s334] sm:$0xf]
        %v414 = vld [vmem:[%s334 + $0x4] sm:$0xf]
        %v415 = vld [vmem:[%s334 + $0x8] sm:$0xf]
        %v416 = vld [vmem:[%s334 + $0xc] sm:$0xf]
        %v417 = vld [vmem:[%s334 + $0x10] sm:$0xf]
        %v418 = vld [vmem:[%s334 + $0x14] sm:$0xf]
        %v419 = vld [vmem:[%s334 + $0x18] sm:$0xf]
        %v420 = vld [vmem:[%s334 + $0x1c] sm:$0xf]
        %v421 = vld [vmem:[%s334 + $0x20] sm:$0xf]
        %v422 = vld [vmem:[%s334 + $0x24] sm:$0xf]
        %v423 = vld [vmem:[%s334 + $0x28] sm:$0xf]
        %v424 = vld [vmem:[%s334 + $0x2c] sm:$0xf]
        %v425 = vld [vmem:[%s334 + $0x30] sm:$0xf]
        %v426 = vld [vmem:[%s334 + $0x34] sm:$0xf]
        %v427 = vld [vmem:[%s334 + $0x38] sm:$0xf]
        %v428 = vld [vmem:[%s334 + $0x3c] sm:$0xf]
        %v429 = vld [vmem:[%s337] sm:$0x1]
        %v431 = vlaneseq
        %v432 = vshrl.u32 %v431, 7
        %v433 = vsub.s32 0, %v432
        %v434 = vrot.slane %v429, %v433
        %v438 = vunpack.c.l.b16 %v411
        %v439 = vunpack.c.l.b16 %v412
        %v440 = vpack.c.b16 %v439, %v438
        %v458 = vunpack.c.l.b16 %v413
        %v459 = vunpack.c.l.b16 %v414
        %v460 = vunpack.c.l.b16 %v415
        %v461 = vunpack.c.l.b16 %v416
        %v462 = vunpack.c.l.b16 %v417
        %v463 = vunpack.c.l.b16 %v418
        %v464 = vunpack.c.l.b16 %v419
        %v465 = vunpack.c.l.b16 %v420
        %v466 = vunpack.c.l.b16 %v421
        %v467 = vunpack.c.l.b16 %v422
        %v468 = vunpack.c.l.b16 %v423
        %v469 = vunpack.c.l.b16 %v424
        %v470 = vunpack.c.l.b16 %v425
        %v471 = vunpack.c.l.b16 %v426
        %v472 = vunpack.c.l.b16 %v427
        %v473 = vunpack.c.l.b16 %v428
        %v474 = vpack.c.b16 %v459, %v458
        %v475 = vpack.c.b16 %v461, %v460
        %v476 = vpack.c.b16 %v463, %v462
        %v477 = vpack.c.b16 %v465, %v464
        %v478 = vpack.c.b16 %v467, %v466
        %v479 = vpack.c.b16 %v469, %v468
        %v480 = vpack.c.b16 %v471, %v470
        %v481 = vpack.c.b16 %v473, %v472
        %490 = vmatprep.subr.bf16.mxu0 0
        %491 = vmatpush1.bf16.msra.mxu0 %v481
        %492 = vmatprep.subr.bf16.mxu0 0
        %493 = vmatpush1.bf16.msra.mxu0 %v480
        %494 = vmatprep.subr.bf16.mxu0 0
        %495 = vmatpush1.bf16.msra.mxu0 %v479
        %496 = vmatprep.subr.bf16.mxu0 0
        %497 = vmatpush1.bf16.msra.mxu0 %v478
        %498 = vmatprep.subr.bf16.mxu0 0
        %499 = vmatpush1.bf16.msra.mxu0 %v477
        %500 = vmatprep.subr.bf16.mxu0 0
        %501 = vmatpush1.bf16.msra.mxu0 %v476
        %502 = vmatprep.subr.bf16.mxu0 0
        %503 = vmatpush1.bf16.msra.mxu0 %v475
        %504 = vmatprep.subr.bf16.mxu0 0
        %505 = vmatpush1.bf16.msra.mxu0 %v474
        %506 = vmatprep.subr.bf16.mxu0 0
        %507 = vmatpush2.bf16.msra.mxu0 0
        %508 = vmatprep.subr.bf16.mxu0 0
        %509 = vmatpush2.bf16.msra.mxu0 0
        %510 = vmatprep.subr.bf16.mxu0 0
        %511 = vmatpush2.bf16.msra.mxu0 0
        %512 = vmatprep.subr.bf16.mxu0 0
        %513 = vmatpush2.bf16.msra.mxu0 0
        %514 = vmatprep.subr.bf16.mxu0 0
        %515 = vmatpush2.bf16.msra.mxu0 0
        %516 = vmatprep.subr.bf16.mxu0 0
        %517 = vmatpush2.bf16.msra.mxu0 0
        %518 = vmatprep.subr.bf16.mxu0 0
        %519 = vmatpush2.bf16.msra.mxu0 0
        %520 = vmatprep.subr.bf16.mxu0 0
        %521 = vmatpush2.bf16.msra.mxu0 0
        %522 = vmatprep.mubr.bf16.mxu0 0
        %523 = vmatmul.mubr.bf16.gmra.mxu0 %v440
        %v524 = vpop.f32.mrf.mxu0
        %v525 = vadd.f32 %v434, %v524
        %v526 = vpop.f32.mrf.mxu0
        %v527 = vpop.f32.mrf.mxu0
        %v528 = vadd.f32 %v434, %v527
        %v529 = vpop.f32.mrf.mxu0
        %530 = vdwg.mxu0
        %v531 = vpack.c.bf16 %v528, %v525
        %v532 = vxor.u32 %v531, 2147516416
        %v534 = vmul.bf16 %v532, 1069105081
        %v535 = vpow.bf16.pop %v534
        %v536 = vadd.bf16 %v535, 1065369472
        %v537 = vrcp.bf16.pop %v536
        %v538 = vmul.bf16 1065369472, %v537
        %v539 = vmul.bf16 %v531, %v538
        %v540 = vld [vmem:[#allocation2] sm:$0xff]
        %v541 = vld [vmem:[#allocation2 + $0x8] sm:$0xff]
        %v542 = vld [vmem:[%s342] sm:$0xf]
        %v543 = vld [vmem:[%s342 + $0x4] sm:$0xf]
        %v544 = vld [vmem:[%s342 + $0x8] sm:$0xf]
        %v545 = vld [vmem:[%s342 + $0xc] sm:$0xf]
        %v546 = vld [vmem:[%s342 + $0x10] sm:$0xf]
        %v547 = vld [vmem:[%s342 + $0x14] sm:$0xf]
        %v548 = vld [vmem:[%s342 + $0x18] sm:$0xf]
        %v549 = vld [vmem:[%s342 + $0x1c] sm:$0xf]
        %v550 = vld [vmem:[%s342 + $0x20] sm:$0xf]
        %v551 = vld [vmem:[%s342 + $0x24] sm:$0xf]
        %v552 = vld [vmem:[%s342 + $0x28] sm:$0xf]
        %v553 = vld [vmem:[%s342 + $0x2c] sm:$0xf]
        %v554 = vld [vmem:[%s342 + $0x30] sm:$0xf]
        %v555 = vld [vmem:[%s342 + $0x34] sm:$0xf]
        %v556 = vld [vmem:[%s342 + $0x38] sm:$0xf]
        %v557 = vld [vmem:[%s342 + $0x3c] sm:$0xf]
        %v574 = vunpack.c.l.b16 %v542
        %v575 = vunpack.c.l.b16 %v543
        %v576 = vunpack.c.l.b16 %v544
        %v577 = vunpack.c.l.b16 %v545
        %v578 = vunpack.c.l.b16 %v546
        %v579 = vunpack.c.l.b16 %v547
        %v580 = vunpack.c.l.b16 %v548
        %v581 = vunpack.c.l.b16 %v549
        %v582 = vunpack.c.l.b16 %v550
        %v583 = vunpack.c.l.b16 %v551
        %v584 = vunpack.c.l.b16 %v552
        %v585 = vunpack.c.l.b16 %v553
        %v586 = vunpack.c.l.b16 %v554
        %v587 = vunpack.c.l.b16 %v555
        %v588 = vunpack.c.l.b16 %v556
        %v589 = vunpack.c.l.b16 %v557
        %v590 = vpack.c.b16 %v575, %v574
        %v591 = vpack.c.b16 %v577, %v576
        %v592 = vpack.c.b16 %v579, %v578
        %v593 = vpack.c.b16 %v581, %v580
        %v594 = vpack.c.b16 %v583, %v582
        %v595 = vpack.c.b16 %v585, %v584
        %v596 = vpack.c.b16 %v587, %v586
        %v597 = vpack.c.b16 %v589, %v588
        %606 = vmatprep.subr.bf16.mxu0 0
        %607 = vmatpush1.bf16.msra.mxu0 %v597
        %608 = vmatprep.subr.bf16.mxu0 0
        %609 = vmatpush1.bf16.msra.mxu0 %v596
        %610 = vmatprep.subr.bf16.mxu0 0
        %611 = vmatpush1.bf16.msra.mxu0 %v595
        %612 = vmatprep.subr.bf16.mxu0 0
        %613 = vmatpush1.bf16.msra.mxu0 %v594
        %614 = vmatprep.subr.bf16.mxu0 0
        %615 = vmatpush1.bf16.msra.mxu0 %v593
        %616 = vmatprep.subr.bf16.mxu0 0
        %617 = vmatpush1.bf16.msra.mxu0 %v592
        %618 = vmatprep.subr.bf16.mxu0 0
        %619 = vmatpush1.bf16.msra.mxu0 %v591
        %620 = vmatprep.subr.bf16.mxu0 0
        %621 = vmatpush1.bf16.msra.mxu0 %v590
        %622 = vmatprep.subr.bf16.mxu0 0
        %623 = vmatpush2.bf16.msra.mxu0 0
        %624 = vmatprep.subr.bf16.mxu0 0
        %625 = vmatpush2.bf16.msra.mxu0 0
        %626 = vmatprep.subr.bf16.mxu0 0
        %627 = vmatpush2.bf16.msra.mxu0 0
        %628 = vmatprep.subr.bf16.mxu0 0
        %629 = vmatpush2.bf16.msra.mxu0 0
        %630 = vmatprep.subr.bf16.mxu0 0
        %631 = vmatpush2.bf16.msra.mxu0 0
        %632 = vmatprep.subr.bf16.mxu0 0
        %633 = vmatpush2.bf16.msra.mxu0 0
        %634 = vmatprep.subr.bf16.mxu0 0
        %635 = vmatpush2.bf16.msra.mxu0 0
        %636 = vmatprep.subr.bf16.mxu0 0
        %637 = vmatpush2.bf16.msra.mxu0 0
        %638 = vmatprep.mubr.bf16.mxu0 0
        %639 = vmatmul.mubr.bf16.gmra.mxu0 %v539
        %v640 = vpop.f32.mrf.mxu0
        %v641 = vadd.f32 0.0, %v640
        %v642 = vpop.f32.mrf.mxu0
        %v643 = vpop.f32.mrf.mxu0
        %v644 = vadd.f32 0.0, %v643
        %v645 = vpop.f32.mrf.mxu0
        %646 = vdwg.mxu0
        %v647 = vadd.f32 %v540, %v641
        %v648 = vadd.f32 %v541, %v644
        %649 = vst [vmem:[#allocation2] sm:$0xff] %v647
        %650 = vst [vmem:[#allocation2 + $0x8] sm:$0xff] %v648
        // Predicated region
        $region53: #{_normalized_ffn_impl.1} parent=47 // pred_check
          %p651 = pneg %p347
        $region54: #{_normalized_ffn_impl.1} parent=47 // pred_check_branch
          %653 = sbr.rel (%p651) target = $region56
        $region55: #{_normalized_ffn_impl.1} parent=47 // pred_region
          %v654 = vld [vmem:[#allocation2] sm:$0xff]
          %v655 = vld [vmem:[#allocation2 + $0x8] sm:$0xff]
          %v656 = vld [vmem:[%s6] sm:$0x1]
          %v658 = vlaneseq
          %v659 = vshrl.u32 %v658, 7
          %v660 = vsub.s32 0, %v659
          %v661 = vrot.slane %v656, %v660
          %v663 = vadd.f32 %v654, %v661
          %v664 = vadd.f32 %v655, %v661
          %v665 = vld [vmem:[%s329] sm:$0xff]
          %v666 = vld [vmem:[%s329 + $0x8] sm:$0xff]
          %v667 = vadd.f32 %v663, %v665
          %v668 = vadd.f32 %v664, %v666
          %669 = vst [vmem:[%s324] sm:$0xff] %v667
          %670 = vst [vmem:[%s324 + $0x8] sm:$0xff] %v668
        $region56: #{_normalized_ffn_impl.1} parent=47 // pred_fallthru
          _
        %s671 = sand.u32 %s208, 1
        %s672 = scalar_lea.sflag [#allocation5], %s671
        %s673 = sand.u32 %s208, 1
        %s674 = smul.addr %s673, 16
        %s675 = scalar_lea.vmem [#allocation4], %s674
        // Predicated region
        $region57: #{_normalized_ffn_impl.1} parent=47 // pred_check
          %p676 = pneg %p218
        $region58: #{_normalized_ffn_impl.1} parent=47 // pred_check_branch
          %678 = sbr.rel (%p676) target = $region60
        $region59: #{_normalized_ffn_impl.1} parent=47 // pred_region
          %s679 = smul.u32 2, %s25
          %s681 = ssub.s32 256, 256
          %682 = vsyncadd %s672, %s681
          %s683 = smul.addr %s679, 128
          %s684 = scalar_lea.hbm %s7, %s683
          %s685 = sshll.u32 %s675, 4
          %s686 = int_to_ptr.vmem [resolvable:$true] %s685
          %691 = dma.vmem_to_hbm [thread:$0]  %s686, 256, %s684, %s672, 128, 128, 8
        $region60: #{_normalized_ffn_impl.1} parent=47 // pred_fallthru
          _
      $region48: #{_normalized_ffn_impl.1} parent=5 // pred_fallthru
        _
      %p692 = scmp.le.s32.totalorder 2, %s16
      // Predicated region
      $region61: #{_normalized_ffn_impl.1} parent=5 // pred_check
        %p693 = pneg %p692
      $region62: #{_normalized_ffn_impl.1} parent=5 // pred_check_branch
        %695 = sbr.rel (%p693) target = $region64
      $region63: #{_normalized_ffn_impl.1} parent=5 // pred_region
        %s696 = ssub.s32 %s16, 2
        // Predicated region
        $region65: #{_normalized_ffn_impl.1} parent=63 // pred_check
          %p697 = pneg %p224
        $region66: #{_normalized_ffn_impl.1} parent=63 // pred_check_branch
          %699 = sbr.rel (%p697) target = $region68
        $region67: #{_normalized_ffn_impl.1} parent=63 // pred_region
          %s700 = sand.u32 %s209, 1
          %s701 = scalar_lea.sflag [#allocation5], %s700
          %s702 = sand.u32 %s209, 1
          %s703 = smul.addr %s702, 16
          %s704 = scalar_lea.vmem [#allocation4], %s703
          %705 = dma.done %s701, 256
        $region68: #{_normalized_ffn_impl.1} parent=63 // pred_fallthru
          _
      $region64: #{_normalized_ffn_impl.1} parent=5 // pred_fallthru
        _
    $region6: #{_normalized_ffn_impl.1} parent=1 // loop_footer
      %s20 = sadd.s32 1, %s16
    $region7: #{_normalized_ffn_impl.1} parent=1 // loop_footer_branch
      %15 = sbr.rel target = $region3
    $region8: #{_normalized_ffn_impl.1} parent=1 // loop_exit
      _
    %706 = vsyncpa [#allocation5], 1
    %s707 = scalar_lea.sflag [#allocation5], 1
    %708 = vsyncpa %s707, 1

</llo_original>
